<compile_context>
chip_gen: v5e
topology: v5e:2x2
jax: 0.10.0
libtpu: 0.0.40
codegen_flags: <defaults>
</compile_context>

<pallas_src>
import functools

import jax
import jax.numpy as jnp
from jax import lax
from jax.experimental import pallas as pl
from jax.experimental.pallas import tpu as pltpu


_STRIP = 64                  # epochs (sublane rows) per inner strip
_INLIER_THRESH_SQ = 100.0    # 10^2 -- squared-distance compare (no sqrt)
_PAD_SENTINEL = 1e6          # padded pstB lanes -> huge residual -> never inlier


# ----------------------------------------------------------------------------
# Pallas kernel: batched per-epoch inlier COUNTS
# ----------------------------------------------------------------------------
def _ransac_count_kernel(params_ref,   # VMEM (E_BLK, 4): [cos, sin, u, v] per epoch
                         a_ref,        # VMEM (2, Npad): pstA[0] coords (x;y), pad=0
                         b_ref,        # VMEM (2, Npad): pstB[0] coords (x;y), pad=sentinel
                         cnt_ref):     # out VMEM (E_BLK, 1): inlier counts (f32)
    ax = a_ref[0:1, :]                 # (1, Npad) -- broadcast over epochs
    ay = a_ref[1:2, :]
    bx = b_ref[0:1, :]
    by = b_ref[1:2, :]

    e_blk = params_ref.shape[0]
    n_strips = e_blk // _STRIP

    def strip(i, carry):
        r0 = pl.multiple_of(i * _STRIP, _STRIP)
        p = params_ref[pl.ds(r0, _STRIP), :]      # (STRIP, 4)
        c = p[:, 0:1]                             # (STRIP, 1)
        s = p[:, 1:2]
        u = p[:, 2:3]
        v = p[:, 3:4]

        # E @ [x, y, 1]^T (third homogeneous component cancels exactly).
        tx = c * ax - s * ay + u                  # (STRIP, Npad)
        ty = s * ax + c * ay + v
        ex = bx - tx
        ey = by - ty
        d2 = ex * ex + ey * ey

        inl = (d2 <= _INLIER_THRESH_SQ).astype(jnp.float32)
        # Cross-lane reduce -> XLU slot; tiny (STRIP, 1) writeback.
        cnt_ref[pl.ds(r0, _STRIP), :] = jnp.sum(inl, axis=-1, keepdims=True)
        return carry

    lax.fori_loop(0, n_strips, strip, 0, unroll=True)


def ransac_counts_pallas(params_pad, a_cm, b_cm, e_pad, n_pad, e_blk):
    """Scores e_pad epochs in blocks of e_blk. Returns counts (e_pad, 1) f32."""
    counts = pl.pallas_call(
        _ransac_count_kernel,
        out_shape=jax.ShapeDtypeStruct((e_pad, 1), jnp.float32),
        grid_spec=pltpu.PrefetchScalarGridSpec(
            num_scalar_prefetch=0,
            grid=(e_pad // e_blk,),
            in_specs=[
                pl.BlockSpec((e_blk, 4), lambda e: (e, 0)),
                pl.BlockSpec((2, n_pad), lambda e: (0, 0)),
                pl.BlockSpec((2, n_pad), lambda e: (0, 0)),
            ],
            out_specs=pl.BlockSpec((e_blk, 1), lambda e: (e, 0)),
        ),
        compiler_params=pltpu.CompilerParams(
            dimension_semantics=("parallel",)),
    )(params_pad, a_cm, b_cm)
    return counts


# ----------------------------------------------------------------------------
# Plain-JAX glue
# ----------------------------------------------------------------------------
def fit_euclidean(a, b, w):
    """Weighted closed-form 2D rigid fit (stand-in for Least_Squares(50)).

    a, b: (K, 2) source / target points; w: (K,) weights.
    Returns (rot, u, v) such that E(rot, u, v) @ [a, 1] ~= [b, 1].
    """
    a = a.astype(jnp.float32)
    b = b.astype(jnp.float32)
    w = w.astype(jnp.float32)
    wsum = jnp.maximum(w.sum(), 1e-6)
    ca = (w[:, None] * a).sum(0) / wsum
    cb = (w[:, None] * b).sum(0) / wsum
    ad = a - ca
    bd = b - cb
    sxx = (w * ad[:, 0] * bd[:, 0]).sum()
    syy = (w * ad[:, 1] * bd[:, 1]).sum()
    sxy = (w * ad[:, 0] * bd[:, 1]).sum()
    syx = (w * ad[:, 1] * bd[:, 0]).sum()
    rot = jnp.arctan2(sxy - syx, sxx + syy)
    c, s = jnp.cos(rot), jnp.sin(rot)
    u = cb[0] - (c * ca[0] - s * ca[1])
    v = cb[1] - (s * ca[0] + c * ca[1])
    return rot, u, v


def build_matrix(c, s, u, v):
    row0 = jnp.stack([c, -s, u])
    row1 = jnp.stack([s, c, v])
    row2 = jnp.array([0.0, 0.0, 1.0], jnp.float32)
    return jnp.stack([row0, row1, row2])


@functools.partial(jax.jit, static_argnames=("thresh", "epochs"))
def ransac_forward(pstA, pstB, key, thresh=0.5, epochs=1000):
    """JAX/Pallas equivalent of RANSAC.forward(pstA, pstB).

    pstA, pstB: (B, N, 2) float32. Only batch 0 is used for scoring, matching
    the PyTorch geometricDistance (pstA[0] / pstB[0]).
    Returns ((rot, u, v), Euclidean_matrix (3, 3)).
    """
    _, N, _ = pstA.shape
    n_pad = max(128, ((N + 127) // 128) * 128)

    # 2 parallel grid steps: near-zero loop overhead on v5e/v6e, and both
    # TensorCores get work on v7x.
    n_grid = 2
    e_blk = ((epochs + n_grid * _STRIP - 1) // (n_grid * _STRIP)) * _STRIP
    e_pad = n_grid * e_blk

    a0 = pstA[0].astype(jnp.float32)
    b0 = pstB[0].astype(jnp.float32)

    # Minimal 5-point samples per epoch (deterministic via PRNG key).
    # TODO(synk): PyTorch samples via random.randrange (with replacement too),
    #             but uses Python's global RNG stream; draws differ.
    idx = jax.random.randint(key, (epochs, 5), 0, N)
    corr1 = a0[idx]  # (E, 5, 2)
    corr2 = b0[idx]
    ones5 = jnp.ones((5,), jnp.float32)
    rot_e, u_e, v_e = jax.vmap(lambda a, b: fit_euclidean(a, b, ones5))(corr1, corr2)
    params = jnp.stack(
        [jnp.cos(rot_e), jnp.sin(rot_e), u_e, v_e], axis=-1).astype(jnp.float32)
    params_pad = jnp.zeros((e_pad, 4), jnp.float32).at[:epochs].set(params)

    # Coordinate-major, lane-padded layouts. Padded pstB lanes carry a huge
    # sentinel so padded points can never be inliers (replaces the valid mask).
    a_cm = jnp.zeros((2, n_pad), jnp.float32).at[:, :N].set(a0.T)
    b_cm = jnp.full((2, n_pad), _PAD_SENTINEL, jnp.float32).at[:, :N].set(b0.T)

    counts_pad = ransac_counts_pallas(params_pad, a_cm, b_cm, e_pad, n_pad, e_blk)
    counts = counts_pad[:epochs, 0].astype(jnp.int32)   # padded epochs dropped

    # Emulate the sequential best-so-far / early-exit loop.
    cummax = jax.lax.cummax(counts, axis=0)
    exceeded = cummax > jnp.int32(N * thresh)
    any_exceed = jnp.any(exceeded)
    stop_e = jnp.where(any_exceed, jnp.argmax(exceeded), epochs - 1)
    counts_prefix = jnp.where(jnp.arange(epochs) <= stop_e, counts, -1)
    best_e = jnp.argmax(counts_prefix)          # first strict maximum, as in torch

    # Recompute the best epoch's inlier mask over the N real points (cheap).
    c_b, s_b, u_b, v_b = params[best_e]
    tx = c_b * a0[:, 0] - s_b * a0[:, 1] + u_b
    ty = s_b * a0[:, 0] + c_b * a0[:, 1] + v_b
    d2 = (b0[:, 0] - tx) ** 2 + (b0[:, 1] - ty) ** 2
    inlier_mask = (d2 <= _INLIER_THRESH_SQ).astype(jnp.float32)

    # Re-fit on the inlier set (weighted, emulating boolean indexing).
    rot_f, u_f, v_f = fit_euclidean(a0, b0, inlier_mask)

    # Euclidean_matrix: from the epoch that triggered the early exit if any,
    # otherwise (the "no good" branch) from the final re-fit.
    c_stop, s_stop, u_stop, v_stop = params[stop_e]
    c_m = jnp.where(any_exceed, c_stop, jnp.cos(rot_f))
    s_m = jnp.where(any_exceed, s_stop, jnp.sin(rot_f))
    u_m = jnp.where(any_exceed, u_stop, u_f)
    v_m = jnp.where(any_exceed, v_stop, v_f)
    e_mat = build_matrix(c_m, s_m, u_m, v_m)

    return (rot_f, u_f, v_f), e_mat


if __name__ == "__main__":
    key = jax.random.PRNGKey(0)
    k_pts, k_noise, k_ransac = jax.random.split(key, 3)

    B, N = 2, 64
    thresh = 0.5
    epochs = 1000  # matches self.epoch in the PyTorch module

    pstA = jax.random.uniform(k_pts, (B, N, 2), jnp.float32, 0.0, 50.0)
    # Ground-truth rigid transform + small noise so inliers exist.
    rot_true, u_true, v_true = 0.3, 5.0, -3.0
    c_t, s_t = jnp.cos(rot_true), jnp.sin(rot_true)
    R_t = jnp.array([[c_t, -s_t], [s_t, c_t]], jnp.float32)
    t_t = jnp.array([u_true, v_true], jnp.float32)
    noise = 0.5 * jax.random.normal(k_noise, (B, N, 2), jnp.float32)
    pstB = pstA @ R_t.T + t_t + noise

    (rot, u, v), e_mat = ransac_forward(pstA, pstB, k_ransac,
                                        thresh=thresh, epochs=epochs)
    jax.block_until_ready(e_mat)
    jax.block_until_ready(rot)
    print("KERNEL_OK")
</pallas_src>

<mosaic_0001>
module attributes {stable_mosaic.version = 11 : i64} {
  func.func @_ransac_count_kernel(%arg0: i32, %arg1: memref<512x4xf32, #tpu.memory_space<vmem>>, %arg2: memref<2x128xf32, #tpu.memory_space<vmem>>, %arg3: memref<2x128xf32, #tpu.memory_space<vmem>>, %arg4: memref<512x1xf32, #tpu.memory_space<vmem>>) attributes {dimension_semantics = [#tpu.dimension_semantics<parallel>], iteration_bounds = array<i64: 2>, scalar_prefetch = 0 : i64, scratch_operands = 0 : i64, tpu.core_type = #tpu.core_type<tc>, window_params = [{transform_indices = @transform_0, window_bounds = array<i64: 512, 4>}, {pipeline_mode = #tpu.pipeline_mode<synchronous>, transform_indices = @transform_1, window_bounds = array<i64: 2, 128>}, {pipeline_mode = #tpu.pipeline_mode<synchronous>, transform_indices = @transform_2, window_bounds = array<i64: 2, 128>}, {transform_indices = @transform_3, window_bounds = array<i64: 512, 1>}]} {
    %c0 = arith.constant 0 : index
    %c0_0 = arith.constant 0 : index
    %0 = vector.load %arg2[%c0, %c0_0] : memref<2x128xf32, #tpu.memory_space<vmem>>, vector<1x128xf32>
    %c1 = arith.constant 1 : index
    %c0_1 = arith.constant 0 : index
    %1 = vector.load %arg2[%c1, %c0_1] : memref<2x128xf32, #tpu.memory_space<vmem>>, vector<1x128xf32>
    %c0_2 = arith.constant 0 : index
    %c0_3 = arith.constant 0 : index
    %2 = vector.load %arg3[%c0_2, %c0_3] : memref<2x128xf32, #tpu.memory_space<vmem>>, vector<1x128xf32>
    %c1_4 = arith.constant 1 : index
    %c0_5 = arith.constant 0 : index
    %3 = vector.load %arg3[%c1_4, %c0_5] : memref<2x128xf32, #tpu.memory_space<vmem>>, vector<1x128xf32>
    %c0_i32 = arith.constant 0 : i32
    %c64_i32 = arith.constant 64 : i32
    %4 = arith.muli %c0_i32, %c64_i32 : i32
    %5 = tpu.assume_multiple %4, 64 : i32
    %6 = arith.index_cast %5 : i32 to index
    %c0_6 = arith.constant 0 : index
    %7 = vector.load %arg1[%6, %c0_6] : memref<512x4xf32, #tpu.memory_space<vmem>>, vector<64x4xf32>
    %8 = vector.extract_strided_slice %7 {offsets = [0, 0], sizes = [64, 1], strides = [1, 1]} : vector<64x4xf32> to vector<64x1xf32>
    %9 = vector.extract_strided_slice %7 {offsets = [0, 1], sizes = [64, 1], strides = [1, 1]} : vector<64x4xf32> to vector<64x1xf32>
    %10 = vector.extract_strided_slice %7 {offsets = [0, 2], sizes = [64, 1], strides = [1, 1]} : vector<64x4xf32> to vector<64x1xf32>
    %11 = vector.extract_strided_slice %7 {offsets = [0, 3], sizes = [64, 1], strides = [1, 1]} : vector<64x4xf32> to vector<64x1xf32>
    %12 = vector.broadcast %8 : vector<64x1xf32> to vector<64x128xf32>
    %13 = vector.broadcast %0 : vector<1x128xf32> to vector<64x128xf32>
    %14 = arith.mulf %12, %13 : vector<64x128xf32>
    %15 = vector.broadcast %9 : vector<64x1xf32> to vector<64x128xf32>
    %16 = vector.broadcast %1 : vector<1x128xf32> to vector<64x128xf32>
    %17 = arith.mulf %15, %16 : vector<64x128xf32>
    %18 = arith.subf %14, %17 : vector<64x128xf32>
    %19 = vector.broadcast %10 : vector<64x1xf32> to vector<64x128xf32>
    %20 = arith.addf %18, %19 : vector<64x128xf32>
    %21 = vector.broadcast %9 : vector<64x1xf32> to vector<64x128xf32>
    %22 = vector.broadcast %0 : vector<1x128xf32> to vector<64x128xf32>
    %23 = arith.mulf %21, %22 : vector<64x128xf32>
    %24 = vector.broadcast %8 : vector<64x1xf32> to vector<64x128xf32>
    %25 = vector.broadcast %1 : vector<1x128xf32> to vector<64x128xf32>
    %26 = arith.mulf %24, %25 : vector<64x128xf32>
    %27 = arith.addf %23, %26 : vector<64x128xf32>
    %28 = vector.broadcast %11 : vector<64x1xf32> to vector<64x128xf32>
    %29 = arith.addf %27, %28 : vector<64x128xf32>
    %30 = vector.broadcast %2 : vector<1x128xf32> to vector<64x128xf32>
    %31 = arith.subf %30, %20 : vector<64x128xf32>
    %32 = vector.broadcast %3 : vector<1x128xf32> to vector<64x128xf32>
    %33 = arith.subf %32, %29 : vector<64x128xf32>
    %34 = arith.mulf %31, %31 : vector<64x128xf32>
    %35 = arith.mulf %33, %33 : vector<64x128xf32>
    %36 = arith.addf %34, %35 : vector<64x128xf32>
    %cst = arith.constant 1.000000e+02 : f32
    %37 = vector.broadcast %cst : f32 to vector<64x128xf32>
    %38 = arith.cmpf ole, %36, %37 : vector<64x128xf32>
    %39 = arith.extui %38 : vector<64x128xi1> to vector<64x128xi32>
    %40 = arith.sitofp %39 : vector<64x128xi32> to vector<64x128xf32>
    %cst_7 = arith.constant dense<0.000000e+00> : vector<64xf32>
    %41 = vector.multi_reduction <add>, %40, %cst_7 [1] : vector<64x128xf32> to vector<64xf32>
    %42 = vector.shape_cast %41 : vector<64xf32> to vector<64x1xf32>
    %43 = arith.index_cast %5 : i32 to index
    %c0_8 = arith.constant 0 : index
    %44 = vector.load %arg4[%43, %c0_8] : memref<512x1xf32, #tpu.memory_space<vmem>>, vector<64x1xf32>
    tpu.vector_store %arg4[%43, %c0_8], %42 {strides = array<i32>} : memref<512x1xf32, #tpu.memory_space<vmem>>, vector<64x1xf32>,
    %c1_i32 = arith.constant 1 : i32
    %c64_i32_9 = arith.constant 64 : i32
    %45 = arith.muli %c1_i32, %c64_i32_9 : i32
    %46 = tpu.assume_multiple %45, 64 : i32
    %47 = arith.index_cast %46 : i32 to index
    %c0_10 = arith.constant 0 : index
    %48 = vector.load %arg1[%47, %c0_10] : memref<512x4xf32, #tpu.memory_space<vmem>>, vector<64x4xf32>
    %49 = vector.extract_strided_slice %48 {offsets = [0, 0], sizes = [64, 1], strides = [1, 1]} : vector<64x4xf32> to vector<64x1xf32>
    %50 = vector.extract_strided_slice %48 {offsets = [0, 1], sizes = [64, 1], strides = [1, 1]} : vector<64x4xf32> to vector<64x1xf32>
    %51 = vector.extract_strided_slice %48 {offsets = [0, 2], sizes = [64, 1], strides = [1, 1]} : vector<64x4xf32> to vector<64x1xf32>
    %52 = vector.extract_strided_slice %48 {offsets = [0, 3], sizes = [64, 1], strides = [1, 1]} : vector<64x4xf32> to vector<64x1xf32>
    %53 = vector.broadcast %49 : vector<64x1xf32> to vector<64x128xf32>
    %54 = vector.broadcast %0 : vector<1x128xf32> to vector<64x128xf32>
    %55 = arith.mulf %53, %54 : vector<64x128xf32>
    %56 = vector.broadcast %50 : vector<64x1xf32> to vector<64x128xf32>
    %57 = vector.broadcast %1 : vector<1x128xf32> to vector<64x128xf32>
    %58 = arith.mulf %56, %57 : vector<64x128xf32>
    %59 = arith.subf %55, %58 : vector<64x128xf32>
    %60 = vector.broadcast %51 : vector<64x1xf32> to vector<64x128xf32>
    %61 = arith.addf %59, %60 : vector<64x128xf32>
    %62 = vector.broadcast %50 : vector<64x1xf32> to vector<64x128xf32>
    %63 = vector.broadcast %0 : vector<1x128xf32> to vector<64x128xf32>
    %64 = arith.mulf %62, %63 : vector<64x128xf32>
    %65 = vector.broadcast %49 : vector<64x1xf32> to vector<64x128xf32>
    %66 = vector.broadcast %1 : vector<1x128xf32> to vector<64x128xf32>
    %67 = arith.mulf %65, %66 : vector<64x128xf32>
    %68 = arith.addf %64, %67 : vector<64x128xf32>
    %69 = vector.broadcast %52 : vector<64x1xf32> to vector<64x128xf32>
    %70 = arith.addf %68, %69 : vector<64x128xf32>
    %71 = vector.broadcast %2 : vector<1x128xf32> to vector<64x128xf32>
    %72 = arith.subf %71, %61 : vector<64x128xf32>
    %73 = vector.broadcast %3 : vector<1x128xf32> to vector<64x128xf32>
    %74 = arith.subf %73, %70 : vector<64x128xf32>
    %75 = arith.mulf %72, %72 : vector<64x128xf32>
    %76 = arith.mulf %74, %74 : vector<64x128xf32>
    %77 = arith.addf %75, %76 : vector<64x128xf32>
    %cst_11 = arith.constant 1.000000e+02 : f32
    %78 = vector.broadcast %cst_11 : f32 to vector<64x128xf32>
    %79 = arith.cmpf ole, %77, %78 : vector<64x128xf32>
    %80 = arith.extui %79 : vector<64x128xi1> to vector<64x128xi32>
    %81 = arith.sitofp %80 : vector<64x128xi32> to vector<64x128xf32>
    %cst_12 = arith.constant dense<0.000000e+00> : vector<64xf32>
    %82 = vector.multi_reduction <add>, %81, %cst_12 [1] : vector<64x128xf32> to vector<64xf32>
    %83 = vector.shape_cast %82 : vector<64xf32> to vector<64x1xf32>
    %84 = arith.index_cast %46 : i32 to index
    %c0_13 = arith.constant 0 : index
    %85 = vector.load %arg4[%84, %c0_13] : memref<512x1xf32, #tpu.memory_space<vmem>>, vector<64x1xf32>
    tpu.vector_store %arg4[%84, %c0_13], %83 {strides = array<i32>} : memref<512x1xf32, #tpu.memory_space<vmem>>, vector<64x1xf32>,
    %c2_i32 = arith.constant 2 : i32
    %c64_i32_14 = arith.constant 64 : i32
    %86 = arith.muli %c2_i32, %c64_i32_14 : i32
    %87 = tpu.assume_multiple %86, 64 : i32
    %88 = arith.index_cast %87 : i32 to index
    %c0_15 = arith.constant 0 : index
    %89 = vector.load %arg1[%88, %c0_15] : memref<512x4xf32, #tpu.memory_space<vmem>>, vector<64x4xf32>
    %90 = vector.extract_strided_slice %89 {offsets = [0, 0], sizes = [64, 1], strides = [1, 1]} : vector<64x4xf32> to vector<64x1xf32>
    %91 = vector.extract_strided_slice %89 {offsets = [0, 1], sizes = [64, 1], strides = [1, 1]} : vector<64x4xf32> to vector<64x1xf32>
    %92 = vector.extract_strided_slice %89 {offsets = [0, 2], sizes = [64, 1], strides = [1, 1]} : vector<64x4xf32> to vector<64x1xf32>
    %93 = vector.extract_strided_slice %89 {offsets = [0, 3], sizes = [64, 1], strides = [1, 1]} : vector<64x4xf32> to vector<64x1xf32>
    %94 = vector.broadcast %90 : vector<64x1xf32> to vector<64x128xf32>
    %95 = vector.broadcast %0 : vector<1x128xf32> to vector<64x128xf32>
    %96 = arith.mulf %94, %95 : vector<64x128xf32>
    %97 = vector.broadcast %91 : vector<64x1xf32> to vector<64x128xf32>
    %98 = vector.broadcast %1 : vector<1x128xf32> to vector<64x128xf32>
    %99 = arith.mulf %97, %98 : vector<64x128xf32>
    %100 = arith.subf %96, %99 : vector<64x128xf32>
    %101 = vector.broadcast %92 : vector<64x1xf32> to vector<64x128xf32>
    %102 = arith.addf %100, %101 : vector<64x128xf32>
    %103 = vector.broadcast %91 : vector<64x1xf32> to vector<64x128xf32>
    %104 = vector.broadcast %0 : vector<1x128xf32> to vector<64x128xf32>
    %105 = arith.mulf %103, %104 : vector<64x128xf32>
    %106 = vector.broadcast %90 : vector<64x1xf32> to vector<64x128xf32>
    %107 = vector.broadcast %1 : vector<1x128xf32> to vector<64x128xf32>
    %108 = arith.mulf %106, %107 : vector<64x128xf32>
    %109 = arith.addf %105, %108 : vector<64x128xf32>
    %110 = vector.broadcast %93 : vector<64x1xf32> to vector<64x128xf32>
    %111 = arith.addf %109, %110 : vector<64x128xf32>
    %112 = vector.broadcast %2 : vector<1x128xf32> to vector<64x128xf32>
    %113 = arith.subf %112, %102 : vector<64x128xf32>
    %114 = vector.broadcast %3 : vector<1x128xf32> to vector<64x128xf32>
    %115 = arith.subf %114, %111 : vector<64x128xf32>
    %116 = arith.mulf %113, %113 : vector<64x128xf32>
    %117 = arith.mulf %115, %115 : vector<64x128xf32>
    %118 = arith.addf %116, %117 : vector<64x128xf32>
    %cst_16 = arith.constant 1.000000e+02 : f32
    %119 = vector.broadcast %cst_16 : f32 to vector<64x128xf32>
    %120 = arith.cmpf ole, %118, %119 : vector<64x128xf32>
    %121 = arith.extui %120 : vector<64x128xi1> to vector<64x128xi32>
    %122 = arith.sitofp %121 : vector<64x128xi32> to vector<64x128xf32>
    %cst_17 = arith.constant dense<0.000000e+00> : vector<64xf32>
    %123 = vector.multi_reduction <add>, %122, %cst_17 [1] : vector<64x128xf32> to vector<64xf32>
    %124 = vector.shape_cast %123 : vector<64xf32> to vector<64x1xf32>
    %125 = arith.index_cast %87 : i32 to index
    %c0_18 = arith.constant 0 : index
    %126 = vector.load %arg4[%125, %c0_18] : memref<512x1xf32, #tpu.memory_space<vmem>>, vector<64x1xf32>
    tpu.vector_store %arg4[%125, %c0_18], %124 {strides = array<i32>} : memref<512x1xf32, #tpu.memory_space<vmem>>, vector<64x1xf32>,
    %c3_i32 = arith.constant 3 : i32
    %c64_i32_19 = arith.constant 64 : i32
    %127 = arith.muli %c3_i32, %c64_i32_19 : i32
    %128 = tpu.assume_multiple %127, 64 : i32
    %129 = arith.index_cast %128 : i32 to index
    %c0_20 = arith.constant 0 : index
    %130 = vector.load %arg1[%129, %c0_20] : memref<512x4xf32, #tpu.memory_space<vmem>>, vector<64x4xf32>
    %131 = vector.extract_strided_slice %130 {offsets = [0, 0], sizes = [64, 1], strides = [1, 1]} : vector<64x4xf32> to vector<64x1xf32>
    %132 = vector.extract_strided_slice %130 {offsets = [0, 1], sizes = [64, 1], strides = [1, 1]} : vector<64x4xf32> to vector<64x1xf32>
    %133 = vector.extract_strided_slice %130 {offsets = [0, 2], sizes = [64, 1], strides = [1, 1]} : vector<64x4xf32> to vector<64x1xf32>
    %134 = vector.extract_strided_slice %130 {offsets = [0, 3], sizes = [64, 1], strides = [1, 1]} : vector<64x4xf32> to vector<64x1xf32>
    %135 = vector.broadcast %131 : vector<64x1xf32> to vector<64x128xf32>
    %136 = vector.broadcast %0 : vector<1x128xf32> to vector<64x128xf32>
    %137 = arith.mulf %135, %136 : vector<64x128xf32>
    %138 = vector.broadcast %132 : vector<64x1xf32> to vector<64x128xf32>
    %139 = vector.broadcast %1 : vector<1x128xf32> to vector<64x128xf32>
    %140 = arith.mulf %138, %139 : vector<64x128xf32>
    %141 = arith.subf %137, %140 : vector<64x128xf32>
    %142 = vector.broadcast %133 : vector<64x1xf32> to vector<64x128xf32>
    %143 = arith.addf %141, %142 : vector<64x128xf32>
    %144 = vector.broadcast %132 : vector<64x1xf32> to vector<64x128xf32>
    %145 = vector.broadcast %0 : vector<1x128xf32> to vector<64x128xf32>
    %146 = arith.mulf %144, %145 : vector<64x128xf32>
    %147 = vector.broadcast %131 : vector<64x1xf32> to vector<64x128xf32>
    %148 = vector.broadcast %1 : vector<1x128xf32> to vector<64x128xf32>
    %149 = arith.mulf %147, %148 : vector<64x128xf32>
    %150 = arith.addf %146, %149 : vector<64x128xf32>
    %151 = vector.broadcast %134 : vector<64x1xf32> to vector<64x128xf32>
    %152 = arith.addf %150, %151 : vector<64x128xf32>
    %153 = vector.broadcast %2 : vector<1x128xf32> to vector<64x128xf32>
    %154 = arith.subf %153, %143 : vector<64x128xf32>
    %155 = vector.broadcast %3 : vector<1x128xf32> to vector<64x128xf32>
    %156 = arith.subf %155, %152 : vector<64x128xf32>
    %157 = arith.mulf %154, %154 : vector<64x128xf32>
    %158 = arith.mulf %156, %156 : vector<64x128xf32>
    %159 = arith.addf %157, %158 : vector<64x128xf32>
    %cst_21 = arith.constant 1.000000e+02 : f32
    %160 = vector.broadcast %cst_21 : f32 to vector<64x128xf32>
    %161 = arith.cmpf ole, %159, %160 : vector<64x128xf32>
    %162 = arith.extui %161 : vector<64x128xi1> to vector<64x128xi32>
    %163 = arith.sitofp %162 : vector<64x128xi32> to vector<64x128xf32>
    %cst_22 = arith.constant dense<0.000000e+00> : vector<64xf32>
    %164 = vector.multi_reduction <add>, %163, %cst_22 [1] : vector<64x128xf32> to vector<64xf32>
    %165 = vector.shape_cast %164 : vector<64xf32> to vector<64x1xf32>
    %166 = arith.index_cast %128 : i32 to index
    %c0_23 = arith.constant 0 : index
    %167 = vector.load %arg4[%166, %c0_23] : memref<512x1xf32, #tpu.memory_space<vmem>>, vector<64x1xf32>
    tpu.vector_store %arg4[%166, %c0_23], %165 {strides = array<i32>} : memref<512x1xf32, #tpu.memory_space<vmem>>, vector<64x1xf32>,
    %c4_i32 = arith.constant 4 : i32
    %c64_i32_24 = arith.constant 64 : i32
    %168 = arith.muli %c4_i32, %c64_i32_24 : i32
    %169 = tpu.assume_multiple %168, 64 : i32
    %170 = arith.index_cast %169 : i32 to index
    %c0_25 = arith.constant 0 : index
    %171 = vector.load %arg1[%170, %c0_25] : memref<512x4xf32, #tpu.memory_space<vmem>>, vector<64x4xf32>
    %172 = vector.extract_strided_slice %171 {offsets = [0, 0], sizes = [64, 1], strides = [1, 1]} : vector<64x4xf32> to vector<64x1xf32>
    %173 = vector.extract_strided_slice %171 {offsets = [0, 1], sizes = [64, 1], strides = [1, 1]} : vector<64x4xf32> to vector<64x1xf32>
    %174 = vector.extract_strided_slice %171 {offsets = [0, 2], sizes = [64, 1], strides = [1, 1]} : vector<64x4xf32> to vector<64x1xf32>
    %175 = vector.extract_strided_slice %171 {offsets = [0, 3], sizes = [64, 1], strides = [1, 1]} : vector<64x4xf32> to vector<64x1xf32>
    %176 = vector.broadcast %172 : vector<64x1xf32> to vector<64x128xf32>
    %177 = vector.broadcast %0 : vector<1x128xf32> to vector<64x128xf32>
    %178 = arith.mulf %176, %177 : vector<64x128xf32>
    %179 = vector.broadcast %173 : vector<64x1xf32> to vector<64x128xf32>
    %180 = vector.broadcast %1 : vector<1x128xf32> to vector<64x128xf32>
    %181 = arith.mulf %179, %180 : vector<64x128xf32>
    %182 = arith.subf %178, %181 : vector<64x128xf32>
    %183 = vector.broadcast %174 : vector<64x1xf32> to vector<64x128xf32>
    %184 = arith.addf %182, %183 : vector<64x128xf32>
    %185 = vector.broadcast %173 : vector<64x1xf32> to vector<64x128xf32>
    %186 = vector.broadcast %0 : vector<1x128xf32> to vector<64x128xf32>
    %187 = arith.mulf %185, %186 : vector<64x128xf32>
    %188 = vector.broadcast %172 : vector<64x1xf32> to vector<64x128xf32>
    %189 = vector.broadcast %1 : vector<1x128xf32> to vector<64x128xf32>
    %190 = arith.mulf %188, %189 : vector<64x128xf32>
    %191 = arith.addf %187, %190 : vector<64x128xf32>
    %192 = vector.broadcast %175 : vector<64x1xf32> to vector<64x128xf32>
    %193 = arith.addf %191, %192 : vector<64x128xf32>
    %194 = vector.broadcast %2 : vector<1x128xf32> to vector<64x128xf32>
    %195 = arith.subf %194, %184 : vector<64x128xf32>
    %196 = vector.broadcast %3 : vector<1x128xf32> to vector<64x128xf32>
    %197 = arith.subf %196, %193 : vector<64x128xf32>
    %198 = arith.mulf %195, %195 : vector<64x128xf32>
    %199 = arith.mulf %197, %197 : vector<64x128xf32>
    %200 = arith.addf %198, %199 : vector<64x128xf32>
    %cst_26 = arith.constant 1.000000e+02 : f32
    %201 = vector.broadcast %cst_26 : f32 to vector<64x128xf32>
    %202 = arith.cmpf ole, %200, %201 : vector<64x128xf32>
    %203 = arith.extui %202 : vector<64x128xi1> to vector<64x128xi32>
    %204 = arith.sitofp %203 : vector<64x128xi32> to vector<64x128xf32>
    %cst_27 = arith.constant dense<0.000000e+00> : vector<64xf32>
    %205 = vector.multi_reduction <add>, %204, %cst_27 [1] : vector<64x128xf32> to vector<64xf32>
    %206 = vector.shape_cast %205 : vector<64xf32> to vector<64x1xf32>
    %207 = arith.index_cast %169 : i32 to index
    %c0_28 = arith.constant 0 : index
    %208 = vector.load %arg4[%207, %c0_28] : memref<512x1xf32, #tpu.memory_space<vmem>>, vector<64x1xf32>
    tpu.vector_store %arg4[%207, %c0_28], %206 {strides = array<i32>} : memref<512x1xf32, #tpu.memory_space<vmem>>, vector<64x1xf32>,
    %c5_i32 = arith.constant 5 : i32
    %c64_i32_29 = arith.constant 64 : i32
    %209 = arith.muli %c5_i32, %c64_i32_29 : i32
    %210 = tpu.assume_multiple %209, 64 : i32
    %211 = arith.index_cast %210 : i32 to index
    %c0_30 = arith.constant 0 : index
    %212 = vector.load %arg1[%211, %c0_30] : memref<512x4xf32, #tpu.memory_space<vmem>>, vector<64x4xf32>
    %213 = vector.extract_strided_slice %212 {offsets = [0, 0], sizes = [64, 1], strides = [1, 1]} : vector<64x4xf32> to vector<64x1xf32>
    %214 = vector.extract_strided_slice %212 {offsets = [0, 1], sizes = [64, 1], strides = [1, 1]} : vector<64x4xf32> to vector<64x1xf32>
    %215 = vector.extract_strided_slice %212 {offsets = [0, 2], sizes = [64, 1], strides = [1, 1]} : vector<64x4xf32> to vector<64x1xf32>
    %216 = vector.extract_strided_slice %212 {offsets = [0, 3], sizes = [64, 1], strides = [1, 1]} : vector<64x4xf32> to vector<64x1xf32>
    %217 = vector.broadcast %213 : vector<64x1xf32> to vector<64x128xf32>
    %218 = vector.broadcast %0 : vector<1x128xf32> to vector<64x128xf32>
    %219 = arith.mulf %217, %218 : vector<64x128xf32>
    %220 = vector.broadcast %214 : vector<64x1xf32> to vector<64x128xf32>
    %221 = vector.broadcast %1 : vector<1x128xf32> to vector<64x128xf32>
    %222 = arith.mulf %220, %221 : vector<64x128xf32>
    %223 = arith.subf %219, %222 : vector<64x128xf32>
    %224 = vector.broadcast %215 : vector<64x1xf32> to vector<64x128xf32>
    %225 = arith.addf %223, %224 : vector<64x128xf32>
    %226 = vector.broadcast %214 : vector<64x1xf32> to vector<64x128xf32>
    %227 = vector.broadcast %0 : vector<1x128xf32> to vector<64x128xf32>
    %228 = arith.mulf %226, %227 : vector<64x128xf32>
    %229 = vector.broadcast %213 : vector<64x1xf32> to vector<64x128xf32>
    %230 = vector.broadcast %1 : vector<1x128xf32> to vector<64x128xf32>
    %231 = arith.mulf %229, %230 : vector<64x128xf32>
    %232 = arith.addf %228, %231 : vector<64x128xf32>
    %233 = vector.broadcast %216 : vector<64x1xf32> to vector<64x128xf32>
    %234 = arith.addf %232, %233 : vector<64x128xf32>
    %235 = vector.broadcast %2 : vector<1x128xf32> to vector<64x128xf32>
    %236 = arith.subf %235, %225 : vector<64x128xf32>
    %237 = vector.broadcast %3 : vector<1x128xf32> to vector<64x128xf32>
    %238 = arith.subf %237, %234 : vector<64x128xf32>
    %239 = arith.mulf %236, %236 : vector<64x128xf32>
    %240 = arith.mulf %238, %238 : vector<64x128xf32>
    %241 = arith.addf %239, %240 : vector<64x128xf32>
    %cst_31 = arith.constant 1.000000e+02 : f32
    %242 = vector.broadcast %cst_31 : f32 to vector<64x128xf32>
    %243 = arith.cmpf ole, %241, %242 : vector<64x128xf32>
    %244 = arith.extui %243 : vector<64x128xi1> to vector<64x128xi32>
    %245 = arith.sitofp %244 : vector<64x128xi32> to vector<64x128xf32>
    %cst_32 = arith.constant dense<0.000000e+00> : vector<64xf32>
    %246 = vector.multi_reduction <add>, %245, %cst_32 [1] : vector<64x128xf32> to vector<64xf32>
    %247 = vector.shape_cast %246 : vector<64xf32> to vector<64x1xf32>
    %248 = arith.index_cast %210 : i32 to index
    %c0_33 = arith.constant 0 : index
    %249 = vector.load %arg4[%248, %c0_33] : memref<512x1xf32, #tpu.memory_space<vmem>>, vector<64x1xf32>
    tpu.vector_store %arg4[%248, %c0_33], %247 {strides = array<i32>} : memref<512x1xf32, #tpu.memory_space<vmem>>, vector<64x1xf32>,
    %c6_i32 = arith.constant 6 : i32
    %c64_i32_34 = arith.constant 64 : i32
    %250 = arith.muli %c6_i32, %c64_i32_34 : i32
    %251 = tpu.assume_multiple %250, 64 : i32
    %252 = arith.index_cast %251 : i32 to index
    %c0_35 = arith.constant 0 : index
    %253 = vector.load %arg1[%252, %c0_35] : memref<512x4xf32, #tpu.memory_space<vmem>>, vector<64x4xf32>
    %254 = vector.extract_strided_slice %253 {offsets = [0, 0], sizes = [64, 1], strides = [1, 1]} : vector<64x4xf32> to vector<64x1xf32>
    %255 = vector.extract_strided_slice %253 {offsets = [0, 1], sizes = [64, 1], strides = [1, 1]} : vector<64x4xf32> to vector<64x1xf32>
    %256 = vector.extract_strided_slice %253 {offsets = [0, 2], sizes = [64, 1], strides = [1, 1]} : vector<64x4xf32> to vector<64x1xf32>
    %257 = vector.extract_strided_slice %253 {offsets = [0, 3], sizes = [64, 1], strides = [1, 1]} : vector<64x4xf32> to vector<64x1xf32>
    %258 = vector.broadcast %254 : vector<64x1xf32> to vector<64x128xf32>
    %259 = vector.broadcast %0 : vector<1x128xf32> to vector<64x128xf32>
    %260 = arith.mulf %258, %259 : vector<64x128xf32>
    %261 = vector.broadcast %255 : vector<64x1xf32> to vector<64x128xf32>
    %262 = vector.broadcast %1 : vector<1x128xf32> to vector<64x128xf32>
    %263 = arith.mulf %261, %262 : vector<64x128xf32>
    %264 = arith.subf %260, %263 : vector<64x128xf32>
    %265 = vector.broadcast %256 : vector<64x1xf32> to vector<64x128xf32>
    %266 = arith.addf %264, %265 : vector<64x128xf32>
    %267 = vector.broadcast %255 : vector<64x1xf32> to vector<64x128xf32>
    %268 = vector.broadcast %0 : vector<1x128xf32> to vector<64x128xf32>
    %269 = arith.mulf %267, %268 : vector<64x128xf32>
    %270 = vector.broadcast %254 : vector<64x1xf32> to vector<64x128xf32>
    %271 = vector.broadcast %1 : vector<1x128xf32> to vector<64x128xf32>
    %272 = arith.mulf %270, %271 : vector<64x128xf32>
    %273 = arith.addf %269, %272 : vector<64x128xf32>
    %274 = vector.broadcast %257 : vector<64x1xf32> to vector<64x128xf32>
    %275 = arith.addf %273, %274 : vector<64x128xf32>
    %276 = vector.broadcast %2 : vector<1x128xf32> to vector<64x128xf32>
    %277 = arith.subf %276, %266 : vector<64x128xf32>
    %278 = vector.broadcast %3 : vector<1x128xf32> to vector<64x128xf32>
    %279 = arith.subf %278, %275 : vector<64x128xf32>
    %280 = arith.mulf %277, %277 : vector<64x128xf32>
    %281 = arith.mulf %279, %279 : vector<64x128xf32>
    %282 = arith.addf %280, %281 : vector<64x128xf32>
    %cst_36 = arith.constant 1.000000e+02 : f32
    %283 = vector.broadcast %cst_36 : f32 to vector<64x128xf32>
    %284 = arith.cmpf ole, %282, %283 : vector<64x128xf32>
    %285 = arith.extui %284 : vector<64x128xi1> to vector<64x128xi32>
    %286 = arith.sitofp %285 : vector<64x128xi32> to vector<64x128xf32>
    %cst_37 = arith.constant dense<0.000000e+00> : vector<64xf32>
    %287 = vector.multi_reduction <add>, %286, %cst_37 [1] : vector<64x128xf32> to vector<64xf32>
    %288 = vector.shape_cast %287 : vector<64xf32> to vector<64x1xf32>
    %289 = arith.index_cast %251 : i32 to index
    %c0_38 = arith.constant 0 : index
    %290 = vector.load %arg4[%289, %c0_38] : memref<512x1xf32, #tpu.memory_space<vmem>>, vector<64x1xf32>
    tpu.vector_store %arg4[%289, %c0_38], %288 {strides = array<i32>} : memref<512x1xf32, #tpu.memory_space<vmem>>, vector<64x1xf32>,
    %c7_i32 = arith.constant 7 : i32
    %c64_i32_39 = arith.constant 64 : i32
    %291 = arith.muli %c7_i32, %c64_i32_39 : i32
    %292 = tpu.assume_multiple %291, 64 : i32
    %293 = arith.index_cast %292 : i32 to index
    %c0_40 = arith.constant 0 : index
    %294 = vector.load %arg1[%293, %c0_40] : memref<512x4xf32, #tpu.memory_space<vmem>>, vector<64x4xf32>
    %295 = vector.extract_strided_slice %294 {offsets = [0, 0], sizes = [64, 1], strides = [1, 1]} : vector<64x4xf32> to vector<64x1xf32>
    %296 = vector.extract_strided_slice %294 {offsets = [0, 1], sizes = [64, 1], strides = [1, 1]} : vector<64x4xf32> to vector<64x1xf32>
    %297 = vector.extract_strided_slice %294 {offsets = [0, 2], sizes = [64, 1], strides = [1, 1]} : vector<64x4xf32> to vector<64x1xf32>
    %298 = vector.extract_strided_slice %294 {offsets = [0, 3], sizes = [64, 1], strides = [1, 1]} : vector<64x4xf32> to vector<64x1xf32>
    %299 = vector.broadcast %295 : vector<64x1xf32> to vector<64x128xf32>
    %300 = vector.broadcast %0 : vector<1x128xf32> to vector<64x128xf32>
    %301 = arith.mulf %299, %300 : vector<64x128xf32>
    %302 = vector.broadcast %296 : vector<64x1xf32> to vector<64x128xf32>
    %303 = vector.broadcast %1 : vector<1x128xf32> to vector<64x128xf32>
    %304 = arith.mulf %302, %303 : vector<64x128xf32>
    %305 = arith.subf %301, %304 : vector<64x128xf32>
    %306 = vector.broadcast %297 : vector<64x1xf32> to vector<64x128xf32>
    %307 = arith.addf %305, %306 : vector<64x128xf32>
    %308 = vector.broadcast %296 : vector<64x1xf32> to vector<64x128xf32>
    %309 = vector.broadcast %0 : vector<1x128xf32> to vector<64x128xf32>
    %310 = arith.mulf %308, %309 : vector<64x128xf32>
    %311 = vector.broadcast %295 : vector<64x1xf32> to vector<64x128xf32>
    %312 = vector.broadcast %1 : vector<1x128xf32> to vector<64x128xf32>
    %313 = arith.mulf %311, %312 : vector<64x128xf32>
    %314 = arith.addf %310, %313 : vector<64x128xf32>
    %315 = vector.broadcast %298 : vector<64x1xf32> to vector<64x128xf32>
    %316 = arith.addf %314, %315 : vector<64x128xf32>
    %317 = vector.broadcast %2 : vector<1x128xf32> to vector<64x128xf32>
    %318 = arith.subf %317, %307 : vector<64x128xf32>
    %319 = vector.broadcast %3 : vector<1x128xf32> to vector<64x128xf32>
    %320 = arith.subf %319, %316 : vector<64x128xf32>
    %321 = arith.mulf %318, %318 : vector<64x128xf32>
    %322 = arith.mulf %320, %320 : vector<64x128xf32>
    %323 = arith.addf %321, %322 : vector<64x128xf32>
    %cst_41 = arith.constant 1.000000e+02 : f32
    %324 = vector.broadcast %cst_41 : f32 to vector<64x128xf32>
    %325 = arith.cmpf ole, %323, %324 : vector<64x128xf32>
    %326 = arith.extui %325 : vector<64x128xi1> to vector<64x128xi32>
    %327 = arith.sitofp %326 : vector<64x128xi32> to vector<64x128xf32>
    %cst_42 = arith.constant dense<0.000000e+00> : vector<64xf32>
    %328 = vector.multi_reduction <add>, %327, %cst_42 [1] : vector<64x128xf32> to vector<64xf32>
    %329 = vector.shape_cast %328 : vector<64xf32> to vector<64x1xf32>
    %330 = arith.index_cast %292 : i32 to index
    %c0_43 = arith.constant 0 : index
    %331 = vector.load %arg4[%330, %c0_43] : memref<512x1xf32, #tpu.memory_space<vmem>>, vector<64x1xf32>
    tpu.vector_store %arg4[%330, %c0_43], %329 {strides = array<i32>} : memref<512x1xf32, #tpu.memory_space<vmem>>, vector<64x1xf32>,
    %c8_i32 = arith.constant 8 : i32
    return
  }
  func.func @transform_0(%arg0: i32) -> (i32, i32) {
    %c0_i32 = arith.constant 0 : i32
    %c0_i32_0 = arith.constant 0 : i32
    return %arg0, %c0_i32 : i32, i32
  }
  func.func @transform_1(%arg0: i32) -> (i32, i32) {
    %c0_i32 = arith.constant 0 : i32
    %c0_i32_0 = arith.constant 0 : i32
    %c0_i32_1 = arith.constant 0 : i32
    return %c0_i32, %c0_i32_0 : i32, i32
  }
  func.func @transform_2(%arg0: i32) -> (i32, i32) {
    %c0_i32 = arith.constant 0 : i32
    %c0_i32_0 = arith.constant 0 : i32
    %c0_i32_1 = arith.constant 0 : i32
    return %c0_i32, %c0_i32_0 : i32, i32
  }
  func.func @transform_3(%arg0: i32) -> (i32, i32) {
    %c0_i32 = arith.constant 0 : i32
    %c0_i32_0 = arith.constant 0 : i32
    return %arg0, %c0_i32 : i32, i32
  }
}

</mosaic_0001>

<llo_original>
// kernel: cos.3
$region0: #{cos.3}
  #allocation0 [shape = 's32[1]{0}', space=sflag, size = 0x4, scoped, tag = 'scoped memory for cos.3']
  %s0 = inlined_call_operand.vmem [shape: f32[1000], index: 0, kind: input, shape index: {}]
  %s1 = inlined_call_operand.vmem [shape: f32[1000], index: 1, kind: output, shape index: {}]
  %v2 = vld [vmem:[%s0] sm:$0xff]
  %v3 = vand.u32 2147483647, %v2
  %vm4 = vcmp.le.f32.partialorder %v3, 0.7853982
  %vm5 = vcmp.lt.s32.totalorder %v2, 0
  %v6 = vand.u32 %v2, 2139095040
  %v7 = vshrl.u32 %v6, 23
  %v8 = vsub.s32 %v7, 127
  %v9 = vand.u32 2147483647, %v2
  %v10 = vand.u32 %v9, 8388607
  %v11 = vor.u32 %v10, 8388608
  %v12 = vsub.s32 0, %v11
  %v13 = vadd.s32 %v8, 1
  %vm14 = vcmp.gt.s32.totalorder %v13, 0
  %v15 = vsel %vm14, %v13, 0
  %v16 = vshrl.u32 %v15, 5
  %v17 = vand.u32 %v15, 31
  %v18 = vsub.s32 32, %v17
  %v19 = vshrl.u32 683565275, %v18
  %v20 = vshll.u32 683565275, %v17
  %v21 = vshrl.u32 2475754826, %v18
  %v22 = vor.u32 %v20, %v21
  %v23 = vshll.u32 2475754826, %v17
  %v24 = vshrl.u32 2131351028, %v18
  %v25 = vor.u32 %v23, %v24
  %v26 = vshll.u32 2131351028, %v17
  %v27 = vshrl.u32 2102212464, %v18
  %v28 = vor.u32 %v26, %v27
  %v29 = vshll.u32 2102212464, %v17
  %v30 = vshrl.u32 920167782, %v18
  %v31 = vor.u32 %v29, %v30
  %v32 = vshll.u32 920167782, %v17
  %v33 = vshrl.u32 1326507024, %v18
  %v34 = vor.u32 %v32, %v33
  %vm35 = vcmp.lt.s32.totalorder %v16, 1
  %vm36 = vcmp.lt.s32.totalorder %v16, 2
  %vm37 = vcmp.lt.s32.totalorder %v16, 3
  %vm38 = vcmp.lt.s32.totalorder %v16, 4
  %v39 = vsel %vm35, %v19, %v22
  %v40 = vsel %vm38, %v28, 2102212464
  %v41 = vsel %vm37, %v25, %v40
  %v42 = vsel %vm36, %v39, %v41
  %v43 = vsel %vm35, %v22, %v25
  %v44 = vsel %vm38, %v31, 920167782
  %v45 = vsel %vm37, %v28, %v44
  %v46 = vsel %vm36, %v43, %v45
  %v47 = vsel %vm35, %v25, %v28
  %v48 = vsel %vm38, %v34, 1326507024
  %v49 = vsel %vm37, %v31, %v48
  %v50 = vsel %vm36, %v47, %v49
  %v51 = vshll.u32 %v11, 8
  %v52 = vand.u32 %v51, 65535
  %v53 = vshrl.u32 %v51, 16
  %v54 = vand.u32 %v50, 65535
  %v55 = vshrl.u32 %v50, 16
  %v56 = vmul.u32 %v52, %v54
  %v57 = vmul.u32 %v52, %v55
  %v58 = vmul.u32 %v53, %v54
  %v59 = vmul.u32 %v53, %v55
  %v60 = vshll.u32 %v57, 16
  %v61 = vshrl.u32 %v57, 16
  %v62 = vshll.u32 %v58, 16
  %v63 = vshrl.u32 %v58, 16
  %vm64 = vc.u32 %v56, %v60
  %v65 = vsel %vm64, 1, 0
  %v66 = vadd.s32 %v56, %v60
  %v67 = vadd.s32 %v59, %v65
  %vm68 = vc.u32 %v66, %v62
  %v69 = vsel %vm68, 1, 0
  %v70 = vadd.s32 %v66, %v62
  %v71 = vadd.s32 %v67, %v69
  %v72 = vadd.s32 %v71, %v61
  %v73 = vadd.s32 %v72, %v63
  %v74 = vand.u32 %v51, 65535
  %v75 = vshrl.u32 %v51, 16
  %v76 = vand.u32 %v46, 65535
  %v77 = vshrl.u32 %v46, 16
  %v78 = vmul.u32 %v74, %v76
  %v79 = vmul.u32 %v74, %v77
  %v80 = vmul.u32 %v75, %v76
  %v81 = vmul.u32 %v75, %v77
  %v82 = vshll.u32 %v79, 16
  %v83 = vshrl.u32 %v79, 16
  %v84 = vshll.u32 %v80, 16
  %v85 = vshrl.u32 %v80, 16
  %vm86 = vc.u32 %v78, %v82
  %v87 = vsel %vm86, 1, 0
  %v88 = vadd.s32 %v78, %v82
  %v89 = vadd.s32 %v81, %v87
  %vm90 = vc.u32 %v88, %v84
  %v91 = vsel %vm90, 1, 0
  %v92 = vadd.s32 %v88, %v84
  %v93 = vadd.s32 %v89, %v91
  %v94 = vadd.s32 %v93, %v83
  %v95 = vadd.s32 %v94, %v85
  %v96 = vmul.u32 %v51, %v42
  %v97 = vadd.s32 %v73, %v92
  %vm98 = vc.u32 %v73, %v92
  %v99 = vadd.s32 %v95, 1
  %v100 = vsel %vm98, %v99, %v95
  %v101 = vadd.s32 %v96, %v100
  %v102 = vadd.s32 %v101, 536870912
  %v103 = vshrl.u32 %v102, 30
  %v104 = vshll.u32 %v103, 30
  %v105 = vsub.s32 %v101, %v104
  %vm106 = vcmp.lt.s32.totalorder %v105, 0
  %v107 = vsub.s32 0, %v105
  %v108 = vsel %vm106, %v107, %v105
  %v109 = vclz %v108
  %v110 = vsub.s32 %v109, 2
  %vm111 = vcmp.gt.s32.totalorder 0, %v110
  %v112 = vsel %vm111, 0, %v110
  %v113 = vsub.s32 32, %v112
  %v114 = vshll.u32 %v105, %v112
  %v115 = vshrl.u32 %v97, %v113
  %v116 = vor.u32 %v114, %v115
  %v117 = vsub.s32 4294967266, %v112
  %v118 = vadd.s32 %v117, 127
  %v119 = vshll.u32 %v118, 23
  %v120 = vor.u32 4788187, %v119
  %v121 = vand.u32 2147483647, %v120
  %v123 = vcvt.s32.f32 %v116
  %v124 = vmul.f32 %v123, %v121
  %v125 = vxor.u32 %v124, 2147483648
  %v126 = vsel %vm5, %v125, %v124
  %v127 = vsub.s32 4, %v103
  %v128 = vsel %vm5, %v127, %v103
  %v129 = vsel %vm4, %v2, %v126
  %v130 = vsel %vm4, 0, %v128
  %v131 = vmul.f32 %v129, %v129
  %v132 = vmul.f32 %v131, -0.001358992
  %v133 = vadd.f32 %v132, 0.041655596
  %v134 = vmul.f32 %v131, %v133
  %v135 = vadd.f32 %v134, -0.4999988
  %v136 = vmul.f32 %v131, %v135
  %v137 = vadd.f32 1.0, %v136
  %v138 = vmul.f32 %v129, %v129
  %v139 = vmul.f32 %v138, -0.00019511016
  %v140 = vadd.f32 %v139, 0.008332121
  %v141 = vmul.f32 %v138, %v140
  %v142 = vadd.f32 %v141, -0.16666654
  %v143 = vmul.f32 %v138, %v142
  %v144 = vadd.f32 %v143, 1.0
  %v145 = vmul.f32 %v144, %v129
  %vm146 = vweird.f32 %v2
  %v147 = vand.u32 %v130, 3
  %vm148 = vcmp.lt.s32.totalorder %v147, 2
  %vm149 = vcmp.eq.s32.totalorder %v147, 0
  %v150 = vxor.u32 %v145, 2147483648
  %v151 = vsel %vm149, %v137, %v150
  %vm152 = vcmp.eq.s32.totalorder %v147, 2
  %v153 = vxor.u32 %v137, 2147483648
  %v154 = vsel %vm152, %v153, %v145
  %v155 = vsel %vm148, %v151, %v154
  %v156 = vsel %vm146, nan, %v155
  %157 = vst [vmem:[%s1] sm:$0xff] %v156

// kernel: ransac_forward.1
$region0: #{ransac_forward.1}
  #allocation0 [shape = 'u32[]', space=smem, size = 0x4, offset = 0x4, fixed_abs, tag = 'smem constant byte address 0x4 - core index']
  #allocation1 [shape = 'u32[72,128]{1,0:T(1,128)}', space=vmem, size = 0x9000, scoped, tag = 'internal scratch']
  %s0 = inlined_call_operand.vmem [shape: f32[1024,4], index: 0, kind: input, shape index: {}]
  %s1 = inlined_call_operand.vmem [shape: f32[2,128], index: 1, kind: input, shape index: {}]
  %s2 = inlined_call_operand.vmem [shape: f32[2,128], index: 2, kind: input, shape index: {}]
  %s3 = inlined_call_operand.vmem [shape: f32[1024,1], index: 3, kind: output, shape index: {}]
  %s4 = sld [smem:[#allocation0]]
  $region45: #{ransac_forward.1} parent=0
    _
  %s6 = ssub.s32 1, %s4
  %s7 = scalar_select 0, %s6, %s4
  loop: start=0, step=1, limit=4
  $region2: #{ransac_forward.1} parent=0 // loop_pre_header
    _
  $region3: #{ransac_forward.1} parent=0 // loop_header
    %s9 = sphi 0, %s13
    %p10 = scmp.ge.s32.totalorder %s9, 4
    %s19 = sphi 0, %s21
    %s22 = sphi 0, %s19
    %s23 = sphi 0, %s22
    %s39 = sphi 0, %s23
    %s43 = sphi 0, %s43
    %s45 = sphi 0, %s43
    %s46 = sphi 0, %s45
    %s60 = sphi 0, %s46
    %s64 = sphi 0, %s64
    %s66 = sphi 0, %s64
    %s67 = sphi 0, %s66
    %s81 = sphi 0, %s67
    %s87 = sphi 0, %s89
    %s90 = sphi 0, %s87
    %s91 = sphi 0, %s90
    %s107 = sphi 0, %s91
  $region4: #{ransac_forward.1} parent=0 // loop_header_branch
    %12 = sbr.rel (%p10) target = $region8
  $region5: #{ransac_forward.1} parent=0 // loop_body
    %s14 = ssub.s32 %s9, 1
    %s15 = ssub.s32 %s9, 2
    %s16 = sadd.s32 %s9, 1
    %s17 = ssub.s32 %s9, %s16
    %p18 = scmp.eq.s32.totalorder %s17, 0
    %s20 = sadd.s32 %s19, 1
    %s21 = scalar_select %p18, %s19, %s20
    %p24 = pneg %p18
    %p25 = scmp.eq.s32.totalorder %s9, 1
    %p26 = por %p24, %p25
    %p27 = scmp.ne.s32.totalorder %s19, %s22
    %p28 = scmp.eq.s32.totalorder %s9, 0
    %p29 = por %p27, %p28
    %p30 = scmp.ne.s32.totalorder %s19, %s22
    %p31 = scmp.eq.s32.totalorder %s14, 1
    %p32 = por %p30, %p31
    %p33 = scmp.ne.s32.totalorder %s22, %s23
    %p34 = scmp.eq.s32.totalorder %s14, 0
    %p35 = por %p33, %p34
    %p36 = scmp.ne.s32.totalorder %s22, %s23
    %p37 = scmp.eq.s32.totalorder %s15, 1
    %p38 = por %p36, %p37
    %p40 = scmp.ne.s32.totalorder %s23, %s39
    %p41 = scmp.eq.s32.totalorder %s15, 0
    %p42 = por %p40, %p41
    %s44 = sadd.s32 %s43, 1
    %p47 = scmp.eq.s32.totalorder %s9, 1
    %p48 = scmp.ne.s32.totalorder %s43, %s45
    %p49 = scmp.eq.s32.totalorder %s9, 0
    %p50 = por %p48, %p49
    %p51 = scmp.ne.s32.totalorder %s43, %s45
    %p52 = scmp.eq.s32.totalorder %s14, 1
    %p53 = por %p51, %p52
    %p54 = scmp.ne.s32.totalorder %s45, %s46
    %p55 = scmp.eq.s32.totalorder %s14, 0
    %p56 = por %p54, %p55
    %p57 = scmp.ne.s32.totalorder %s45, %s46
    %p58 = scmp.eq.s32.totalorder %s15, 1
    %p59 = por %p57, %p58
    %p61 = scmp.ne.s32.totalorder %s46, %s60
    %p62 = scmp.eq.s32.totalorder %s15, 0
    %p63 = por %p61, %p62
    %s65 = sadd.s32 %s64, 1
    %p68 = scmp.eq.s32.totalorder %s9, 1
    %p69 = scmp.ne.s32.totalorder %s64, %s66
    %p70 = scmp.eq.s32.totalorder %s9, 0
    %p71 = por %p69, %p70
    %p72 = scmp.ne.s32.totalorder %s64, %s66
    %p73 = scmp.eq.s32.totalorder %s14, 1
    %p74 = por %p72, %p73
    %p75 = scmp.ne.s32.totalorder %s66, %s67
    %p76 = scmp.eq.s32.totalorder %s14, 0
    %p77 = por %p75, %p76
    %p78 = scmp.ne.s32.totalorder %s66, %s67
    %p79 = scmp.eq.s32.totalorder %s15, 1
    %p80 = por %p78, %p79
    %p82 = scmp.ne.s32.totalorder %s67, %s81
    %p83 = scmp.eq.s32.totalorder %s15, 0
    %p84 = por %p82, %p83
    %s85 = ssub.s32 %s9, %s16
    %p86 = scmp.eq.s32.totalorder %s85, 0
    %s88 = sadd.s32 %s87, 1
    %s89 = scalar_select %p86, %s87, %s88
    %p92 = pneg %p86
    %p93 = scmp.eq.s32.totalorder %s9, 1
    %p94 = por %p92, %p93
    %p95 = scmp.ne.s32.totalorder %s87, %s90
    %p96 = scmp.eq.s32.totalorder %s9, 0
    %p97 = por %p95, %p96
    %p98 = scmp.ne.s32.totalorder %s87, %s90
    %p99 = scmp.eq.s32.totalorder %s14, 1
    %p100 = por %p98, %p99
    %p101 = scmp.ne.s32.totalorder %s90, %s91
    %p102 = scmp.eq.s32.totalorder %s14, 0
    %p103 = por %p101, %p102
    %p104 = scmp.ne.s32.totalorder %s90, %s91
    %p105 = scmp.eq.s32.totalorder %s15, 1
    %p106 = por %p104, %p105
    %p108 = scmp.ne.s32.totalorder %s91, %s107
    %p109 = scmp.eq.s32.totalorder %s15, 0
    %p110 = por %p108, %p109
    %p111 = scmp.le.s32.totalorder 1, %s9
    %p112 = scmp.lt.s32.totalorder %s9, 3
    %p113 = pnand %p111, %p112
    %p114 = pneg %p113
    // Predicated region
    $region9: #{ransac_forward.1} parent=5 // pred_check
      _
    $region10: #{ransac_forward.1} parent=5 // pred_check_branch
      %116 = sbr.rel (%p113) target = $region12
    $region11: #{ransac_forward.1} parent=5 // pred_region
      %s117 = ssub.s32 %s9, 1
      // Predicated region
      $region13: #{ransac_forward.1} parent=11 // pred_check
        %p118 = pneg %p56
      $region14: #{ransac_forward.1} parent=11 // pred_check_branch
        %120 = sbr.rel (%p118) target = $region16
      $region15: #{ransac_forward.1} parent=11 // pred_region
        _
      $region16: #{ransac_forward.1} parent=11 // pred_fallthru
        _
      // Predicated region
      $region17: #{ransac_forward.1} parent=11 // pred_check
        %p121 = pneg %p77
      $region18: #{ransac_forward.1} parent=11 // pred_check_branch
        %123 = sbr.rel (%p121) target = $region20
      $region19: #{ransac_forward.1} parent=11 // pred_region
        _
      $region20: #{ransac_forward.1} parent=11 // pred_fallthru
        _
    $region12: #{ransac_forward.1} parent=5 // pred_fallthru
      _
    %p124 = scmp.lt.s32.totalorder %s9, 2
    // Predicated region
    $region21: #{ransac_forward.1} parent=5 // pred_check
      %p125 = pneg %p124
    $region22: #{ransac_forward.1} parent=5 // pred_check_branch
      %127 = sbr.rel (%p125) target = $region24
    $region23: #{ransac_forward.1} parent=5 // pred_region
      // Predicated region
      $region25: #{ransac_forward.1} parent=23 // pred_check
        %p128 = pneg %p29
      $region26: #{ransac_forward.1} parent=23 // pred_check_branch
        %130 = sbr.rel (%p128) target = $region28
      $region27: #{ransac_forward.1} parent=23 // pred_region
        %s131 = smul.u32 64, %s9
        %p132 = scmp.lt.s32.totalorder %s131, 127
        %s133 = scalar_select %p132, %s131, 127
        %s134 = smul.addr %s133, 8
        %s135 = scalar_lea.vmem %s0, %s134
        %s136 = smul.u32 64, %s9
      $region28: #{ransac_forward.1} parent=23 // pred_fallthru
        _
    $region24: #{ransac_forward.1} parent=5 // pred_fallthru
      _
    %p137 = scmp.le.s32.totalorder 1, %s9
    %p138 = scmp.lt.s32.totalorder %s9, 3
    %p139 = pnand %p137, %p138
    %p140 = pneg %p139
    // Predicated region
    $region29: #{ransac_forward.1} parent=5 // pred_check
      _
    $region30: #{ransac_forward.1} parent=5 // pred_check_branch
      %142 = sbr.rel (%p139) target = $region32
    $region31: #{ransac_forward.1} parent=5 // pred_region
      %s143 = ssub.s32 %s9, 1
      %s144 = smul.u32 64, %s14
      %p145 = scmp.lt.s32.totalorder %s144, 127
      %s146 = scalar_select %p145, %s144, 127
      %s147 = smul.addr %s146, 8
      %s148 = scalar_lea.vmem %s0, %s147
      %p149 = pneg %p35
      %p150 = pneg %p32
      %p151 = pneg %p56
      %p152 = pneg %p53
      %p153 = pneg %p77
      %p154 = pneg %p74
      %p155 = pneg %p103
      %p156 = pneg %p100
      %s157 = smul.u32 64, %s14
      %p158 = scmp.lt.s32.totalorder %s157, 127
      %s159 = scalar_select %p158, %s157, 127
      %s160 = smul.addr %s159, 8
      %s161 = scalar_lea.vmem %s3, %s160
      %s162 = smul.u32 64, %s14
      %p163 = scmp.lt.s32.totalorder %s162, 127
      %s164 = scalar_select %p163, %s162, 127
      %s165 = smul.addr %s164, 8
      %s166 = scalar_lea.vmem %s0, %s165
      %s167 = smul.u32 64, %s14
      %s168 = smul.u32 64, %s14
      %p169 = scmp.lt.s32.totalorder %s168, 127
      %s170 = scalar_select %p169, %s168, 127
      %s171 = smul.addr %s170, 8
      %s172 = scalar_lea.vmem %s3, %s171
      %s173 = smul.u32 64, %s14
      %v174 = vld [vmem:[%s1] sm:$0x1]
      %v175 = vld [vmem:[%s1 + $0x1] sm:$0x1]
      %v176 = vld [vmem:[%s2] sm:$0x1]
      %v177 = vld [vmem:[%s2 + $0x1] sm:$0x1]
      %v178 = vld [vmem:[%s166] sm:$0xff]
      %v179 = vld [vmem:[%s166 + $0x8] sm:$0xff]
      %v180 = vld [vmem:[%s166 + $0x10] sm:$0xff]
      %v181 = vld [vmem:[%s166 + $0x18] sm:$0xff]
      %v182 = vld [vmem:[%s166 + $0x20] sm:$0xff]
      %v183 = vld [vmem:[%s166 + $0x28] sm:$0xff]
      %v184 = vld [vmem:[%s166 + $0x30] sm:$0xff]
      %v185 = vld [vmem:[%s166 + $0x38] sm:$0xff]
      %187 = vset.pattern.permute.xlu0 0
      %188 = vperm.xlu0 %187, %v178
      %v189 = vpop.permute.xlu0 %188
      %192 = vset.pattern.permute.xlu0 0
      %193 = vperm.xlu0 %192, %v179
      %v194 = vpop.permute.xlu0 %193
      %197 = vset.pattern.permute.xlu0 0
      %198 = vperm.xlu0 %197, %v180
      %v199 = vpop.permute.xlu0 %198
      %202 = vset.pattern.permute.xlu0 0
      %203 = vperm.xlu0 %202, %v181
      %v204 = vpop.permute.xlu0 %203
      %207 = vset.pattern.permute.xlu0 0
      %208 = vperm.xlu0 %207, %v182
      %v209 = vpop.permute.xlu0 %208
      %212 = vset.pattern.permute.xlu0 0
      %213 = vperm.xlu0 %212, %v183
      %v214 = vpop.permute.xlu0 %213
      %217 = vset.pattern.permute.xlu0 0
      %218 = vperm.xlu0 %217, %v184
      %v219 = vpop.permute.xlu0 %218
      %222 = vset.pattern.permute.xlu0 0
      %223 = vperm.xlu0 %222, %v185
      %v224 = vpop.permute.xlu0 %223
      %v226 = vperm.slane %v174, 0
      %v227 = vmul.f32 %v189, %v226
      %v228 = vmul.f32 %v194, %v226
      %v229 = vmul.f32 %v199, %v226
      %v230 = vmul.f32 %v204, %v226
      %v231 = vmul.f32 %v209, %v226
      %v232 = vmul.f32 %v214, %v226
      %v233 = vmul.f32 %v219, %v226
      %v234 = vmul.f32 %v224, %v226
      %235 = vset.pattern.permute.xlu0 1
      %236 = vperm.xlu0 %235, %v178
      %v237 = vpop.permute.xlu0 %236
      %239 = vset.pattern.permute.xlu0 1
      %240 = vperm.xlu0 %239, %v179
      %v241 = vpop.permute.xlu0 %240
      %243 = vset.pattern.permute.xlu0 1
      %244 = vperm.xlu0 %243, %v180
      %v245 = vpop.permute.xlu0 %244
      %247 = vset.pattern.permute.xlu0 1
      %248 = vperm.xlu0 %247, %v181
      %v249 = vpop.permute.xlu0 %248
      %251 = vset.pattern.permute.xlu0 1
      %252 = vperm.xlu0 %251, %v182
      %v253 = vpop.permute.xlu0 %252
      %255 = vset.pattern.permute.xlu0 1
      %256 = vperm.xlu0 %255, %v183
      %v257 = vpop.permute.xlu0 %256
      %259 = vset.pattern.permute.xlu0 1
      %260 = vperm.xlu0 %259, %v184
      %v261 = vpop.permute.xlu0 %260
      %263 = vset.pattern.permute.xlu0 1
      %264 = vperm.xlu0 %263, %v185
      %v265 = vpop.permute.xlu0 %264
      %v267 = vperm.slane %v175, 0
      %v268 = vmul.f32 %v237, %v267
      %v269 = vmul.f32 %v241, %v267
      %v270 = vmul.f32 %v245, %v267
      %v271 = vmul.f32 %v249, %v267
      %v272 = vmul.f32 %v253, %v267
      %v273 = vmul.f32 %v257, %v267
      %v274 = vmul.f32 %v261, %v267
      %v275 = vmul.f32 %v265, %v267
      %v276 = vsub.f32 %v227, %v268
      %v277 = vsub.f32 %v228, %v269
      %v278 = vsub.f32 %v229, %v270
      %v279 = vsub.f32 %v230, %v271
      %v280 = vsub.f32 %v231, %v272
      %v281 = vsub.f32 %v232, %v273
      %v282 = vsub.f32 %v233, %v274
      %v283 = vsub.f32 %v234, %v275
      %284 = vset.pattern.permute.xlu0 2
      %285 = vperm.xlu0 %284, %v178
      %v286 = vpop.permute.xlu0 %285
      %288 = vset.pattern.permute.xlu0 2
      %289 = vperm.xlu0 %288, %v179
      %v290 = vpop.permute.xlu0 %289
      %292 = vset.pattern.permute.xlu0 2
      %293 = vperm.xlu0 %292, %v180
      %v294 = vpop.permute.xlu0 %293
      %296 = vset.pattern.permute.xlu0 2
      %297 = vperm.xlu0 %296, %v181
      %v298 = vpop.permute.xlu0 %297
      %300 = vset.pattern.permute.xlu0 2
      %301 = vperm.xlu0 %300, %v182
      %v302 = vpop.permute.xlu0 %301
      %304 = vset.pattern.permute.xlu0 2
      %305 = vperm.xlu0 %304, %v183
      %v306 = vpop.permute.xlu0 %305
      %308 = vset.pattern.permute.xlu0 2
      %309 = vperm.xlu0 %308, %v184
      %v310 = vpop.permute.xlu0 %309
      %312 = vset.pattern.permute.xlu0 2
      %313 = vperm.xlu0 %312, %v185
      %v314 = vpop.permute.xlu0 %313
      %v316 = vadd.f32 %v276, %v286
      %v317 = vadd.f32 %v277, %v290
      %v318 = vadd.f32 %v278, %v294
      %v319 = vadd.f32 %v279, %v298
      %v320 = vadd.f32 %v280, %v302
      %v321 = vadd.f32 %v281, %v306
      %v322 = vadd.f32 %v282, %v310
      %v323 = vadd.f32 %v283, %v314
      %v324 = vmul.f32 %v237, %v226
      %v325 = vmul.f32 %v241, %v226
      %v326 = vmul.f32 %v245, %v226
      %v327 = vmul.f32 %v249, %v226
      %v328 = vmul.f32 %v253, %v226
      %v329 = vmul.f32 %v257, %v226
      %v330 = vmul.f32 %v261, %v226
      %v331 = vmul.f32 %v265, %v226
      %v332 = vmul.f32 %v189, %v267
      %v333 = vmul.f32 %v194, %v267
      %v334 = vmul.f32 %v199, %v267
      %v335 = vmul.f32 %v204, %v267
      %v336 = vmul.f32 %v209, %v267
      %v337 = vmul.f32 %v214, %v267
      %v338 = vmul.f32 %v219, %v267
      %v339 = vmul.f32 %v224, %v267
      %v340 = vadd.f32 %v324, %v332
      %v341 = vadd.f32 %v325, %v333
      %v342 = vadd.f32 %v326, %v334
      %v343 = vadd.f32 %v327, %v335
      %v344 = vadd.f32 %v328, %v336
      %v345 = vadd.f32 %v329, %v337
      %v346 = vadd.f32 %v330, %v338
      %v347 = vadd.f32 %v331, %v339
      %348 = vset.pattern.permute.xlu0 3
      %349 = vperm.xlu0 %348, %v178
      %v350 = vpop.permute.xlu0 %349
      %352 = vset.pattern.permute.xlu0 3
      %353 = vperm.xlu0 %352, %v179
      %v354 = vpop.permute.xlu0 %353
      %356 = vset.pattern.permute.xlu0 3
      %357 = vperm.xlu0 %356, %v180
      %v358 = vpop.permute.xlu0 %357
      %360 = vset.pattern.permute.xlu0 3
      %361 = vperm.xlu0 %360, %v181
      %v362 = vpop.permute.xlu0 %361
      %364 = vset.pattern.permute.xlu0 3
      %365 = vperm.xlu0 %364, %v182
      %v366 = vpop.permute.xlu0 %365
      %368 = vset.pattern.permute.xlu0 3
      %369 = vperm.xlu0 %368, %v183
      %v370 = vpop.permute.xlu0 %369
      %372 = vset.pattern.permute.xlu0 3
      %373 = vperm.xlu0 %372, %v184
      %v374 = vpop.permute.xlu0 %373
      %376 = vset.pattern.permute.xlu0 3
      %377 = vperm.xlu0 %376, %v185
      %v378 = vpop.permute.xlu0 %377
      %v380 = vadd.f32 %v340, %v350
      %v381 = vadd.f32 %v341, %v354
      %v382 = vadd.f32 %v342, %v358
      %v383 = vadd.f32 %v343, %v362
      %v384 = vadd.f32 %v344, %v366
      %v385 = vadd.f32 %v345, %v370
      %v386 = vadd.f32 %v346, %v374
      %v387 = vadd.f32 %v347, %v378
      %v388 = vperm.slane %v176, 0
      %v389 = vsub.f32 %v388, %v316
      %v390 = vsub.f32 %v388, %v317
      %v391 = vsub.f32 %v388, %v318
      %v392 = vsub.f32 %v388, %v319
      %v393 = vsub.f32 %v388, %v320
      %v394 = vsub.f32 %v388, %v321
      %v395 = vsub.f32 %v388, %v322
      %v396 = vsub.f32 %v388, %v323
      %v397 = vperm.slane %v177, 0
      %v398 = vsub.f32 %v397, %v380
      %v399 = vsub.f32 %v397, %v381
      %v400 = vsub.f32 %v397, %v382
      %v401 = vsub.f32 %v397, %v383
      %v402 = vsub.f32 %v397, %v384
      %v403 = vsub.f32 %v397, %v385
      %v404 = vsub.f32 %v397, %v386
      %v405 = vsub.f32 %v397, %v387
      %v406 = vmul.f32 %v389, %v389
      %v407 = vmul.f32 %v390, %v390
      %v408 = vmul.f32 %v391, %v391
      %v409 = vmul.f32 %v392, %v392
      %v410 = vmul.f32 %v393, %v393
      %v411 = vmul.f32 %v394, %v394
      %v412 = vmul.f32 %v395, %v395
      %v413 = vmul.f32 %v396, %v396
      %v414 = vmul.f32 %v398, %v398
      %v415 = vmul.f32 %v399, %v399
      %v416 = vmul.f32 %v400, %v400
      %v417 = vmul.f32 %v401, %v401
      %v418 = vmul.f32 %v402, %v402
      %v419 = vmul.f32 %v403, %v403
      %v420 = vmul.f32 %v404, %v404
      %v421 = vmul.f32 %v405, %v405
      %v422 = vadd.f32 %v406, %v414
      %v423 = vadd.f32 %v407, %v415
      %v424 = vadd.f32 %v408, %v416
      %v425 = vadd.f32 %v409, %v417
      %v426 = vadd.f32 %v410, %v418
      %v427 = vadd.f32 %v411, %v419
      %v428 = vadd.f32 %v412, %v420
      %v429 = vadd.f32 %v413, %v421
      %vm430 = vcmp.le.f32.partialorder %v422, 100.0
      %vm431 = vcmp.le.f32.partialorder %v423, 100.0
      %vm432 = vcmp.le.f32.partialorder %v424, 100.0
      %vm433 = vcmp.le.f32.partialorder %v425, 100.0
      %vm434 = vcmp.le.f32.partialorder %v426, 100.0
      %vm435 = vcmp.le.f32.partialorder %v427, 100.0
      %vm436 = vcmp.le.f32.partialorder %v428, 100.0
      %vm437 = vcmp.le.f32.partialorder %v429, 100.0
      %v438 = vsel %vm430, 1, 0
      %v439 = vsel %vm431, 1, 0
      %v440 = vsel %vm432, 1, 0
      %v441 = vsel %vm433, 1, 0
      %v442 = vsel %vm434, 1, 0
      %v443 = vsel %vm435, 1, 0
      %v444 = vsel %vm436, 1, 0
      %v445 = vsel %vm437, 1, 0
      %v446 = vcvt.s32.f32 %v438
      %v447 = vcvt.s32.f32 %v439
      %v448 = vcvt.s32.f32 %v440
      %v449 = vcvt.s32.f32 %v441
      %v450 = vcvt.s32.f32 %v442
      %v451 = vcvt.s32.f32 %v443
      %v452 = vcvt.s32.f32 %v444
      %v453 = vcvt.s32.f32 %v445
      %454 = vadd.xlane.f32.xlu0 %v446
      %v455 = vpop.xlane.xlu0 %454
      %456 = vadd.xlane.f32.xlu0 %v447
      %v457 = vpop.xlane.xlu0 %456
      %458 = vadd.xlane.f32.xlu0 %v448
      %v459 = vpop.xlane.xlu0 %458
      %460 = vadd.xlane.f32.xlu0 %v449
      %v461 = vpop.xlane.xlu0 %460
      %462 = vadd.xlane.f32.xlu0 %v450
      %v463 = vpop.xlane.xlu0 %462
      %464 = vadd.xlane.f32.xlu0 %v451
      %v465 = vpop.xlane.xlu0 %464
      %466 = vadd.xlane.f32.xlu0 %v452
      %v467 = vpop.xlane.xlu0 %466
      %468 = vadd.xlane.f32.xlu0 %v453
      %v469 = vpop.xlane.xlu0 %468
      %vm470 = vcmask 7168
      %471 = vst.msk [vmem:[%s172] sm:$0xff] %vm470, %v455
      %472 = vst.msk [vmem:[%s172 + $0x8] sm:$0xff] %vm470, %v457
      %473 = vst.msk [vmem:[%s172 + $0x10] sm:$0xff] %vm470, %v459
      %474 = vst.msk [vmem:[%s172 + $0x18] sm:$0xff] %vm470, %v461
      %475 = vst.msk [vmem:[%s172 + $0x20] sm:$0xff] %vm470, %v463
      %476 = vst.msk [vmem:[%s172 + $0x28] sm:$0xff] %vm470, %v465
      %477 = vst.msk [vmem:[%s172 + $0x30] sm:$0xff] %vm470, %v467
      %478 = vst.msk [vmem:[%s172 + $0x38] sm:$0xff] %vm470, %v469
      %s479 = scalar_lea.vmem %s166, 64
      %v480 = vld [vmem:[%s479] sm:$0xff]
      %v481 = vld [vmem:[%s479 + $0x8] sm:$0xff]
      %v482 = vld [vmem:[%s479 + $0x10] sm:$0xff]
      %v483 = vld [vmem:[%s479 + $0x18] sm:$0xff]
      %v484 = vld [vmem:[%s479 + $0x20] sm:$0xff]
      %v485 = vld [vmem:[%s479 + $0x28] sm:$0xff]
      %v486 = vld [vmem:[%s479 + $0x30] sm:$0xff]
      %v487 = vld [vmem:[%s479 + $0x38] sm:$0xff]
      %489 = vset.pattern.permute.xlu0 0
      %490 = vperm.xlu0 %489, %v480
      %v491 = vpop.permute.xlu0 %490
      %494 = vset.pattern.permute.xlu0 0
      %495 = vperm.xlu0 %494, %v481
      %v496 = vpop.permute.xlu0 %495
      %499 = vset.pattern.permute.xlu0 0
      %500 = vperm.xlu0 %499, %v482
      %v501 = vpop.permute.xlu0 %500
      %504 = vset.pattern.permute.xlu0 0
      %505 = vperm.xlu0 %504, %v483
      %v506 = vpop.permute.xlu0 %505
      %509 = vset.pattern.permute.xlu0 0
      %510 = vperm.xlu0 %509, %v484
      %v511 = vpop.permute.xlu0 %510
      %514 = vset.pattern.permute.xlu0 0
      %515 = vperm.xlu0 %514, %v485
      %v516 = vpop.permute.xlu0 %515
      %519 = vset.pattern.permute.xlu0 0
      %520 = vperm.xlu0 %519, %v486
      %v521 = vpop.permute.xlu0 %520
      %524 = vset.pattern.permute.xlu0 0
      %525 = vperm.xlu0 %524, %v487
      %v526 = vpop.permute.xlu0 %525
      %v528 = vmul.f32 %v491, %v226
      %v529 = vmul.f32 %v496, %v226
      %v530 = vmul.f32 %v501, %v226
      %v531 = vmul.f32 %v506, %v226
      %v532 = vmul.f32 %v511, %v226
      %v533 = vmul.f32 %v516, %v226
      %v534 = vmul.f32 %v521, %v226
      %v535 = vmul.f32 %v526, %v226
      %536 = vset.pattern.permute.xlu0 1
      %537 = vperm.xlu0 %536, %v480
      %v538 = vpop.permute.xlu0 %537
      %540 = vset.pattern.permute.xlu0 1
      %541 = vperm.xlu0 %540, %v481
      %v542 = vpop.permute.xlu0 %541
      %544 = vset.pattern.permute.xlu0 1
      %545 = vperm.xlu0 %544, %v482
      %v546 = vpop.permute.xlu0 %545
      %548 = vset.pattern.permute.xlu0 1
      %549 = vperm.xlu0 %548, %v483
      %v550 = vpop.permute.xlu0 %549
      %552 = vset.pattern.permute.xlu0 1
      %553 = vperm.xlu0 %552, %v484
      %v554 = vpop.permute.xlu0 %553
      %556 = vset.pattern.permute.xlu0 1
      %557 = vperm.xlu0 %556, %v485
      %v558 = vpop.permute.xlu0 %557
      %560 = vset.pattern.permute.xlu0 1
      %561 = vperm.xlu0 %560, %v486
      %v562 = vpop.permute.xlu0 %561
      %564 = vset.pattern.permute.xlu0 1
      %565 = vperm.xlu0 %564, %v487
      %v566 = vpop.permute.xlu0 %565
      %v568 = vmul.f32 %v538, %v267
      %v569 = vmul.f32 %v542, %v267
      %v570 = vmul.f32 %v546, %v267
      %v571 = vmul.f32 %v550, %v267
      %v572 = vmul.f32 %v554, %v267
      %v573 = vmul.f32 %v558, %v267
      %v574 = vmul.f32 %v562, %v267
      %v575 = vmul.f32 %v566, %v267
      %v576 = vsub.f32 %v528, %v568
      %v577 = vsub.f32 %v529, %v569
      %v578 = vsub.f32 %v530, %v570
      %v579 = vsub.f32 %v531, %v571
      %v580 = vsub.f32 %v532, %v572
      %v581 = vsub.f32 %v533, %v573
      %v582 = vsub.f32 %v534, %v574
      %v583 = vsub.f32 %v535, %v575
      %584 = vset.pattern.permute.xlu0 2
      %585 = vperm.xlu0 %584, %v480
      %v586 = vpop.permute.xlu0 %585
      %588 = vset.pattern.permute.xlu0 2
      %589 = vperm.xlu0 %588, %v481
      %v590 = vpop.permute.xlu0 %589
      %592 = vset.pattern.permute.xlu0 2
      %593 = vperm.xlu0 %592, %v482
      %v594 = vpop.permute.xlu0 %593
      %596 = vset.pattern.permute.xlu0 2
      %597 = vperm.xlu0 %596, %v483
      %v598 = vpop.permute.xlu0 %597
      %600 = vset.pattern.permute.xlu0 2
      %601 = vperm.xlu0 %600, %v484
      %v602 = vpop.permute.xlu0 %601
      %604 = vset.pattern.permute.xlu0 2
      %605 = vperm.xlu0 %604, %v485
      %v606 = vpop.permute.xlu0 %605
      %608 = vset.pattern.permute.xlu0 2
      %609 = vperm.xlu0 %608, %v486
      %v610 = vpop.permute.xlu0 %609
      %612 = vset.pattern.permute.xlu0 2
      %613 = vperm.xlu0 %612, %v487
      %v614 = vpop.permute.xlu0 %613
      %v616 = vadd.f32 %v576, %v586
      %v617 = vadd.f32 %v577, %v590
      %v618 = vadd.f32 %v578, %v594
      %v619 = vadd.f32 %v579, %v598
      %v620 = vadd.f32 %v580, %v602
      %v621 = vadd.f32 %v581, %v606
      %v622 = vadd.f32 %v582, %v610
      %v623 = vadd.f32 %v583, %v614
      %v624 = vmul.f32 %v538, %v226
      %v625 = vmul.f32 %v542, %v226
      %v626 = vmul.f32 %v546, %v226
      %v627 = vmul.f32 %v550, %v226
      %v628 = vmul.f32 %v554, %v226
      %v629 = vmul.f32 %v558, %v226
      %v630 = vmul.f32 %v562, %v226
      %v631 = vmul.f32 %v566, %v226
      %v632 = vmul.f32 %v491, %v267
      %v633 = vmul.f32 %v496, %v267
      %v634 = vmul.f32 %v501, %v267
      %v635 = vmul.f32 %v506, %v267
      %v636 = vmul.f32 %v511, %v267
      %v637 = vmul.f32 %v516, %v267
      %v638 = vmul.f32 %v521, %v267
      %v639 = vmul.f32 %v526, %v267
      %v640 = vadd.f32 %v624, %v632
      %v641 = vadd.f32 %v625, %v633
      %v642 = vadd.f32 %v626, %v634
      %v643 = vadd.f32 %v627, %v635
      %v644 = vadd.f32 %v628, %v636
      %v645 = vadd.f32 %v629, %v637
      %v646 = vadd.f32 %v630, %v638
      %v647 = vadd.f32 %v631, %v639
      %648 = vset.pattern.permute.xlu0 3
      %649 = vperm.xlu0 %648, %v480
      %v650 = vpop.permute.xlu0 %649
      %652 = vset.pattern.permute.xlu0 3
      %653 = vperm.xlu0 %652, %v481
      %v654 = vpop.permute.xlu0 %653
      %656 = vset.pattern.permute.xlu0 3
      %657 = vperm.xlu0 %656, %v482
      %v658 = vpop.permute.xlu0 %657
      %660 = vset.pattern.permute.xlu0 3
      %661 = vperm.xlu0 %660, %v483
      %v662 = vpop.permute.xlu0 %661
      %664 = vset.pattern.permute.xlu0 3
      %665 = vperm.xlu0 %664, %v484
      %v666 = vpop.permute.xlu0 %665
      %668 = vset.pattern.permute.xlu0 3
      %669 = vperm.xlu0 %668, %v485
      %v670 = vpop.permute.xlu0 %669
      %672 = vset.pattern.permute.xlu0 3
      %673 = vperm.xlu0 %672, %v486
      %v674 = vpop.permute.xlu0 %673
      %676 = vset.pattern.permute.xlu0 3
      %677 = vperm.xlu0 %676, %v487
      %v678 = vpop.permute.xlu0 %677
      %v680 = vadd.f32 %v640, %v650
      %v681 = vadd.f32 %v641, %v654
      %v682 = vadd.f32 %v642, %v658
      %v683 = vadd.f32 %v643, %v662
      %v684 = vadd.f32 %v644, %v666
      %v685 = vadd.f32 %v645, %v670
      %v686 = vadd.f32 %v646, %v674
      %v687 = vadd.f32 %v647, %v678
      %v688 = vsub.f32 %v388, %v616
      %v689 = vsub.f32 %v388, %v617
      %v690 = vsub.f32 %v388, %v618
      %v691 = vsub.f32 %v388, %v619
      %v692 = vsub.f32 %v388, %v620
      %v693 = vsub.f32 %v388, %v621
      %v694 = vsub.f32 %v388, %v622
      %v695 = vsub.f32 %v388, %v623
      %v696 = vsub.f32 %v397, %v680
      %v697 = vsub.f32 %v397, %v681
      %v698 = vsub.f32 %v397, %v682
      %v699 = vsub.f32 %v397, %v683
      %v700 = vsub.f32 %v397, %v684
      %v701 = vsub.f32 %v397, %v685
      %v702 = vsub.f32 %v397, %v686
      %v703 = vsub.f32 %v397, %v687
      %v704 = vmul.f32 %v688, %v688
      %v705 = vmul.f32 %v689, %v689
      %v706 = vmul.f32 %v690, %v690
      %v707 = vmul.f32 %v691, %v691
      %v708 = vmul.f32 %v692, %v692
      %v709 = vmul.f32 %v693, %v693
      %v710 = vmul.f32 %v694, %v694
      %v711 = vmul.f32 %v695, %v695
      %v712 = vmul.f32 %v696, %v696
      %v713 = vmul.f32 %v697, %v697
      %v714 = vmul.f32 %v698, %v698
      %v715 = vmul.f32 %v699, %v699
      %v716 = vmul.f32 %v700, %v700
      %v717 = vmul.f32 %v701, %v701
      %v718 = vmul.f32 %v702, %v702
      %v719 = vmul.f32 %v703, %v703
      %v720 = vadd.f32 %v704, %v712
      %v721 = vadd.f32 %v705, %v713
      %v722 = vadd.f32 %v706, %v714
      %v723 = vadd.f32 %v707, %v715
      %v724 = vadd.f32 %v708, %v716
      %v725 = vadd.f32 %v709, %v717
      %v726 = vadd.f32 %v710, %v718
      %v727 = vadd.f32 %v711, %v719
      %vm728 = vcmp.le.f32.partialorder %v720, 100.0
      %vm729 = vcmp.le.f32.partialorder %v721, 100.0
      %vm730 = vcmp.le.f32.partialorder %v722, 100.0
      %vm731 = vcmp.le.f32.partialorder %v723, 100.0
      %vm732 = vcmp.le.f32.partialorder %v724, 100.0
      %vm733 = vcmp.le.f32.partialorder %v725, 100.0
      %vm734 = vcmp.le.f32.partialorder %v726, 100.0
      %vm735 = vcmp.le.f32.partialorder %v727, 100.0
      %v736 = vsel %vm728, 1, 0
      %v737 = vsel %vm729, 1, 0
      %v738 = vsel %vm730, 1, 0
      %v739 = vsel %vm731, 1, 0
      %v740 = vsel %vm732, 1, 0
      %v741 = vsel %vm733, 1, 0
      %v742 = vsel %vm734, 1, 0
      %v743 = vsel %vm735, 1, 0
      %v744 = vcvt.s32.f32 %v736
      %v745 = vcvt.s32.f32 %v737
      %v746 = vcvt.s32.f32 %v738
      %v747 = vcvt.s32.f32 %v739
      %v748 = vcvt.s32.f32 %v740
      %v749 = vcvt.s32.f32 %v741
      %v750 = vcvt.s32.f32 %v742
      %v751 = vcvt.s32.f32 %v743
      %752 = vadd.xlane.f32.xlu0 %v744
      %v753 = vpop.xlane.xlu0 %752
      %754 = vadd.xlane.f32.xlu0 %v745
      %v755 = vpop.xlane.xlu0 %754
      %756 = vadd.xlane.f32.xlu0 %v746
      %v757 = vpop.xlane.xlu0 %756
      %758 = vadd.xlane.f32.xlu0 %v747
      %v759 = vpop.xlane.xlu0 %758
      %760 = vadd.xlane.f32.xlu0 %v748
      %v761 = vpop.xlane.xlu0 %760
      %762 = vadd.xlane.f32.xlu0 %v749
      %v763 = vpop.xlane.xlu0 %762
      %764 = vadd.xlane.f32.xlu0 %v750
      %v765 = vpop.xlane.xlu0 %764
      %766 = vadd.xlane.f32.xlu0 %v751
      %v767 = vpop.xlane.xlu0 %766
      %s768 = scalar_lea.vmem %s172, 64
      %769 = vst.msk [vmem:[%s768] sm:$0xff] %vm470, %v753
      %770 = vst.msk [vmem:[%s768 + $0x8] sm:$0xff] %vm470, %v755
      %771 = vst.msk [vmem:[%s768 + $0x10] sm:$0xff] %vm470, %v757
      %772 = vst.msk [vmem:[%s768 + $0x18] sm:$0xff] %vm470, %v759
      %773 = vst.msk [vmem:[%s768 + $0x20] sm:$0xff] %vm470, %v761
      %774 = vst.msk [vmem:[%s768 + $0x28] sm:$0xff] %vm470, %v763
      %775 = vst.msk [vmem:[%s768 + $0x30] sm:$0xff] %vm470, %v765
      %776 = vst.msk [vmem:[%s768 + $0x38] sm:$0xff] %vm470, %v767
      %s777 = scalar_lea.vmem %s166, 128
      %v778 = vld [vmem:[%s777] sm:$0xff]
      %v779 = vld [vmem:[%s777 + $0x8] sm:$0xff]
      %v780 = vld [vmem:[%s777 + $0x10] sm:$0xff]
      %v781 = vld [vmem:[%s777 + $0x18] sm:$0xff]
      %v782 = vld [vmem:[%s777 + $0x20] sm:$0xff]
      %v783 = vld [vmem:[%s777 + $0x28] sm:$0xff]
      %v784 = vld [vmem:[%s777 + $0x30] sm:$0xff]
      %v785 = vld [vmem:[%s777 + $0x38] sm:$0xff]
      %787 = vset.pattern.permute.xlu0 0
      %788 = vperm.xlu0 %787, %v778
      %v789 = vpop.permute.xlu0 %788
      %792 = vset.pattern.permute.xlu0 0
      %793 = vperm.xlu0 %792, %v779
      %v794 = vpop.permute.xlu0 %793
      %797 = vset.pattern.permute.xlu0 0
      %798 = vperm.xlu0 %797, %v780
      %v799 = vpop.permute.xlu0 %798
      %802 = vset.pattern.permute.xlu0 0
      %803 = vperm.xlu0 %802, %v781
      %v804 = vpop.permute.xlu0 %803
      %807 = vset.pattern.permute.xlu0 0
      %808 = vperm.xlu0 %807, %v782
      %v809 = vpop.permute.xlu0 %808
      %812 = vset.pattern.permute.xlu0 0
      %813 = vperm.xlu0 %812, %v783
      %v814 = vpop.permute.xlu0 %813
      %817 = vset.pattern.permute.xlu0 0
      %818 = vperm.xlu0 %817, %v784
      %v819 = vpop.permute.xlu0 %818
      %822 = vset.pattern.permute.xlu0 0
      %823 = vperm.xlu0 %822, %v785
      %v824 = vpop.permute.xlu0 %823
      %v826 = vmul.f32 %v789, %v226
      %v827 = vmul.f32 %v794, %v226
      %v828 = vmul.f32 %v799, %v226
      %v829 = vmul.f32 %v804, %v226
      %v830 = vmul.f32 %v809, %v226
      %v831 = vmul.f32 %v814, %v226
      %v832 = vmul.f32 %v819, %v226
      %v833 = vmul.f32 %v824, %v226
      %834 = vset.pattern.permute.xlu0 1
      %835 = vperm.xlu0 %834, %v778
      %v836 = vpop.permute.xlu0 %835
      %838 = vset.pattern.permute.xlu0 1
      %839 = vperm.xlu0 %838, %v779
      %v840 = vpop.permute.xlu0 %839
      %842 = vset.pattern.permute.xlu0 1
      %843 = vperm.xlu0 %842, %v780
      %v844 = vpop.permute.xlu0 %843
      %846 = vset.pattern.permute.xlu0 1
      %847 = vperm.xlu0 %846, %v781
      %v848 = vpop.permute.xlu0 %847
      %850 = vset.pattern.permute.xlu0 1
      %851 = vperm.xlu0 %850, %v782
      %v852 = vpop.permute.xlu0 %851
      %854 = vset.pattern.permute.xlu0 1
      %855 = vperm.xlu0 %854, %v783
      %v856 = vpop.permute.xlu0 %855
      %858 = vset.pattern.permute.xlu0 1
      %859 = vperm.xlu0 %858, %v784
      %v860 = vpop.permute.xlu0 %859
      %862 = vset.pattern.permute.xlu0 1
      %863 = vperm.xlu0 %862, %v785
      %v864 = vpop.permute.xlu0 %863
      %v866 = vmul.f32 %v836, %v267
      %v867 = vmul.f32 %v840, %v267
      %v868 = vmul.f32 %v844, %v267
      %v869 = vmul.f32 %v848, %v267
      %v870 = vmul.f32 %v852, %v267
      %v871 = vmul.f32 %v856, %v267
      %v872 = vmul.f32 %v860, %v267
      %v873 = vmul.f32 %v864, %v267
      %v874 = vsub.f32 %v826, %v866
      %v875 = vsub.f32 %v827, %v867
      %v876 = vsub.f32 %v828, %v868
      %v877 = vsub.f32 %v829, %v869
      %v878 = vsub.f32 %v830, %v870
      %v879 = vsub.f32 %v831, %v871
      %v880 = vsub.f32 %v832, %v872
      %v881 = vsub.f32 %v833, %v873
      %882 = vset.pattern.permute.xlu0 2
      %883 = vperm.xlu0 %882, %v778
      %v884 = vpop.permute.xlu0 %883
      %886 = vset.pattern.permute.xlu0 2
      %887 = vperm.xlu0 %886, %v779
      %v888 = vpop.permute.xlu0 %887
      %890 = vset.pattern.permute.xlu0 2
      %891 = vperm.xlu0 %890, %v780
      %v892 = vpop.permute.xlu0 %891
      %894 = vset.pattern.permute.xlu0 2
      %895 = vperm.xlu0 %894, %v781
      %v896 = vpop.permute.xlu0 %895
      %898 = vset.pattern.permute.xlu0 2
      %899 = vperm.xlu0 %898, %v782
      %v900 = vpop.permute.xlu0 %899
      %902 = vset.pattern.permute.xlu0 2
      %903 = vperm.xlu0 %902, %v783
      %v904 = vpop.permute.xlu0 %903
      %906 = vset.pattern.permute.xlu0 2
      %907 = vperm.xlu0 %906, %v784
      %v908 = vpop.permute.xlu0 %907
      %910 = vset.pattern.permute.xlu0 2
      %911 = vperm.xlu0 %910, %v785
      %v912 = vpop.permute.xlu0 %911
      %v914 = vadd.f32 %v874, %v884
      %v915 = vadd.f32 %v875, %v888
      %v916 = vadd.f32 %v876, %v892
      %v917 = vadd.f32 %v877, %v896
      %v918 = vadd.f32 %v878, %v900
      %v919 = vadd.f32 %v879, %v904
      %v920 = vadd.f32 %v880, %v908
      %v921 = vadd.f32 %v881, %v912
      %v922 = vmul.f32 %v836, %v226
      %v923 = vmul.f32 %v840, %v226
      %v924 = vmul.f32 %v844, %v226
      %v925 = vmul.f32 %v848, %v226
      %v926 = vmul.f32 %v852, %v226
      %v927 = vmul.f32 %v856, %v226
      %v928 = vmul.f32 %v860, %v226
      %v929 = vmul.f32 %v864, %v226
      %v930 = vmul.f32 %v789, %v267
      %v931 = vmul.f32 %v794, %v267
      %v932 = vmul.f32 %v799, %v267
      %v933 = vmul.f32 %v804, %v267
      %v934 = vmul.f32 %v809, %v267
      %v935 = vmul.f32 %v814, %v267
      %v936 = vmul.f32 %v819, %v267
      %v937 = vmul.f32 %v824, %v267
      %v938 = vadd.f32 %v922, %v930
      %v939 = vadd.f32 %v923, %v931
      %v940 = vadd.f32 %v924, %v932
      %v941 = vadd.f32 %v925, %v933
      %v942 = vadd.f32 %v926, %v934
      %v943 = vadd.f32 %v927, %v935
      %v944 = vadd.f32 %v928, %v936
      %v945 = vadd.f32 %v929, %v937
      %946 = vset.pattern.permute.xlu0 3
      %947 = vperm.xlu0 %946, %v778
      %v948 = vpop.permute.xlu0 %947
      %950 = vset.pattern.permute.xlu0 3
      %951 = vperm.xlu0 %950, %v779
      %v952 = vpop.permute.xlu0 %951
      %954 = vset.pattern.permute.xlu0 3
      %955 = vperm.xlu0 %954, %v780
      %v956 = vpop.permute.xlu0 %955
      %958 = vset.pattern.permute.xlu0 3
      %959 = vperm.xlu0 %958, %v781
      %v960 = vpop.permute.xlu0 %959
      %962 = vset.pattern.permute.xlu0 3
      %963 = vperm.xlu0 %962, %v782
      %v964 = vpop.permute.xlu0 %963
      %966 = vset.pattern.permute.xlu0 3
      %967 = vperm.xlu0 %966, %v783
      %v968 = vpop.permute.xlu0 %967
      %970 = vset.pattern.permute.xlu0 3
      %971 = vperm.xlu0 %970, %v784
      %v972 = vpop.permute.xlu0 %971
      %974 = vset.pattern.permute.xlu0 3
      %975 = vperm.xlu0 %974, %v785
      %v976 = vpop.permute.xlu0 %975
      %v978 = vadd.f32 %v938, %v948
      %v979 = vadd.f32 %v939, %v952
      %v980 = vadd.f32 %v940, %v956
      %v981 = vadd.f32 %v941, %v960
      %v982 = vadd.f32 %v942, %v964
      %v983 = vadd.f32 %v943, %v968
      %v984 = vadd.f32 %v944, %v972
      %v985 = vadd.f32 %v945, %v976
      %v986 = vsub.f32 %v388, %v914
      %v987 = vsub.f32 %v388, %v915
      %v988 = vsub.f32 %v388, %v916
      %v989 = vsub.f32 %v388, %v917
      %v990 = vsub.f32 %v388, %v918
      %v991 = vsub.f32 %v388, %v919
      %v992 = vsub.f32 %v388, %v920
      %v993 = vsub.f32 %v388, %v921
      %v994 = vsub.f32 %v397, %v978
      %v995 = vsub.f32 %v397, %v979
      %v996 = vsub.f32 %v397, %v980
      %v997 = vsub.f32 %v397, %v981
      %v998 = vsub.f32 %v397, %v982
      %v999 = vsub.f32 %v397, %v983
      %v1000 = vsub.f32 %v397, %v984
      %v1001 = vsub.f32 %v397, %v985
      %v1002 = vmul.f32 %v986, %v986
      %v1003 = vmul.f32 %v987, %v987
      %v1004 = vmul.f32 %v988, %v988
      %v1005 = vmul.f32 %v989, %v989
      %v1006 = vmul.f32 %v990, %v990
      %v1007 = vmul.f32 %v991, %v991
      %v1008 = vmul.f32 %v992, %v992
      %v1009 = vmul.f32 %v993, %v993
      %v1010 = vmul.f32 %v994, %v994
      %v1011 = vmul.f32 %v995, %v995
      %v1012 = vmul.f32 %v996, %v996
      %v1013 = vmul.f32 %v997, %v997
      %v1014 = vmul.f32 %v998, %v998
      %v1015 = vmul.f32 %v999, %v999
      %v1016 = vmul.f32 %v1000, %v1000
      %v1017 = vmul.f32 %v1001, %v1001
      %v1018 = vadd.f32 %v1002, %v1010
      %v1019 = vadd.f32 %v1003, %v1011
      %v1020 = vadd.f32 %v1004, %v1012
      %v1021 = vadd.f32 %v1005, %v1013
      %v1022 = vadd.f32 %v1006, %v1014
      %v1023 = vadd.f32 %v1007, %v1015
      %v1024 = vadd.f32 %v1008, %v1016
      %v1025 = vadd.f32 %v1009, %v1017
      %vm1026 = vcmp.le.f32.partialorder %v1018, 100.0
      %vm1027 = vcmp.le.f32.partialorder %v1019, 100.0
      %vm1028 = vcmp.le.f32.partialorder %v1020, 100.0
      %vm1029 = vcmp.le.f32.partialorder %v1021, 100.0
      %vm1030 = vcmp.le.f32.partialorder %v1022, 100.0
      %vm1031 = vcmp.le.f32.partialorder %v1023, 100.0
      %vm1032 = vcmp.le.f32.partialorder %v1024, 100.0
      %vm1033 = vcmp.le.f32.partialorder %v1025, 100.0
      %v1034 = vsel %vm1026, 1, 0
      %v1035 = vsel %vm1027, 1, 0
      %v1036 = vsel %vm1028, 1, 0
      %v1037 = vsel %vm1029, 1, 0
      %v1038 = vsel %vm1030, 1, 0
      %v1039 = vsel %vm1031, 1, 0
      %v1040 = vsel %vm1032, 1, 0
      %v1041 = vsel %vm1033, 1, 0
      %v1042 = vcvt.s32.f32 %v1034
      %v1043 = vcvt.s32.f32 %v1035
      %v1044 = vcvt.s32.f32 %v1036
      %v1045 = vcvt.s32.f32 %v1037
      %v1046 = vcvt.s32.f32 %v1038
      %v1047 = vcvt.s32.f32 %v1039
      %v1048 = vcvt.s32.f32 %v1040
      %v1049 = vcvt.s32.f32 %v1041
      %1050 = vadd.xlane.f32.xlu0 %v1042
      %v1051 = vpop.xlane.xlu0 %1050
      %1052 = vadd.xlane.f32.xlu0 %v1043
      %v1053 = vpop.xlane.xlu0 %1052
      %1054 = vadd.xlane.f32.xlu0 %v1044
      %v1055 = vpop.xlane.xlu0 %1054
      %1056 = vadd.xlane.f32.xlu0 %v1045
      %v1057 = vpop.xlane.xlu0 %1056
      %1058 = vadd.xlane.f32.xlu0 %v1046
      %v1059 = vpop.xlane.xlu0 %1058
      %1060 = vadd.xlane.f32.xlu0 %v1047
      %v1061 = vpop.xlane.xlu0 %1060
      %1062 = vadd.xlane.f32.xlu0 %v1048
      %v1063 = vpop.xlane.xlu0 %1062
      %1064 = vadd.xlane.f32.xlu0 %v1049
      %v1065 = vpop.xlane.xlu0 %1064
      %s1066 = scalar_lea.vmem %s172, 128
      %1067 = vst.msk [vmem:[%s1066] sm:$0xff] %vm470, %v1051
      %1068 = vst.msk [vmem:[%s1066 + $0x8] sm:$0xff] %vm470, %v1053
      %1069 = vst.msk [vmem:[%s1066 + $0x10] sm:$0xff] %vm470, %v1055
      %1070 = vst.msk [vmem:[%s1066 + $0x18] sm:$0xff] %vm470, %v1057
      %1071 = vst.msk [vmem:[%s1066 + $0x20] sm:$0xff] %vm470, %v1059
      %1072 = vst.msk [vmem:[%s1066 + $0x28] sm:$0xff] %vm470, %v1061
      %1073 = vst.msk [vmem:[%s1066 + $0x30] sm:$0xff] %vm470, %v1063
      %1074 = vst.msk [vmem:[%s1066 + $0x38] sm:$0xff] %vm470, %v1065
      %s1075 = scalar_lea.vmem %s166, 192
      %v1076 = vld [vmem:[%s1075] sm:$0xff]
      %v1077 = vld [vmem:[%s1075 + $0x8] sm:$0xff]
      %v1078 = vld [vmem:[%s1075 + $0x10] sm:$0xff]
      %v1079 = vld [vmem:[%s1075 + $0x18] sm:$0xff]
      %v1080 = vld [vmem:[%s1075 + $0x20] sm:$0xff]
      %v1081 = vld [vmem:[%s1075 + $0x28] sm:$0xff]
      %v1082 = vld [vmem:[%s1075 + $0x30] sm:$0xff]
      %v1083 = vld [vmem:[%s1075 + $0x38] sm:$0xff]
      %1085 = vset.pattern.permute.xlu0 0
      %1086 = vperm.xlu0 %1085, %v1076
      %v1087 = vpop.permute.xlu0 %1086
      %1090 = vset.pattern.permute.xlu0 0
      %1091 = vperm.xlu0 %1090, %v1077
      %v1092 = vpop.permute.xlu0 %1091
      %1095 = vset.pattern.permute.xlu0 0
      %1096 = vperm.xlu0 %1095, %v1078
      %v1097 = vpop.permute.xlu0 %1096
      %1100 = vset.pattern.permute.xlu0 0
      %1101 = vperm.xlu0 %1100, %v1079
      %v1102 = vpop.permute.xlu0 %1101
      %1105 = vset.pattern.permute.xlu0 0
      %1106 = vperm.xlu0 %1105, %v1080
      %v1107 = vpop.permute.xlu0 %1106
      %1110 = vset.pattern.permute.xlu0 0
      %1111 = vperm.xlu0 %1110, %v1081
      %v1112 = vpop.permute.xlu0 %1111
      %1115 = vset.pattern.permute.xlu0 0
      %1116 = vperm.xlu0 %1115, %v1082
      %v1117 = vpop.permute.xlu0 %1116
      %1120 = vset.pattern.permute.xlu0 0
      %1121 = vperm.xlu0 %1120, %v1083
      %v1122 = vpop.permute.xlu0 %1121
      %v1124 = vmul.f32 %v1087, %v226
      %v1125 = vmul.f32 %v1092, %v226
      %v1126 = vmul.f32 %v1097, %v226
      %v1127 = vmul.f32 %v1102, %v226
      %v1128 = vmul.f32 %v1107, %v226
      %v1129 = vmul.f32 %v1112, %v226
      %v1130 = vmul.f32 %v1117, %v226
      %v1131 = vmul.f32 %v1122, %v226
      %1132 = vset.pattern.permute.xlu0 1
      %1133 = vperm.xlu0 %1132, %v1076
      %v1134 = vpop.permute.xlu0 %1133
      %1136 = vset.pattern.permute.xlu0 1
      %1137 = vperm.xlu0 %1136, %v1077
      %v1138 = vpop.permute.xlu0 %1137
      %1140 = vset.pattern.permute.xlu0 1
      %1141 = vperm.xlu0 %1140, %v1078
      %v1142 = vpop.permute.xlu0 %1141
      %1144 = vset.pattern.permute.xlu0 1
      %1145 = vperm.xlu0 %1144, %v1079
      %v1146 = vpop.permute.xlu0 %1145
      %1148 = vset.pattern.permute.xlu0 1
      %1149 = vperm.xlu0 %1148, %v1080
      %v1150 = vpop.permute.xlu0 %1149
      %1152 = vset.pattern.permute.xlu0 1
      %1153 = vperm.xlu0 %1152, %v1081
      %v1154 = vpop.permute.xlu0 %1153
      %1156 = vset.pattern.permute.xlu0 1
      %1157 = vperm.xlu0 %1156, %v1082
      %v1158 = vpop.permute.xlu0 %1157
      %1160 = vset.pattern.permute.xlu0 1
      %1161 = vperm.xlu0 %1160, %v1083
      %v1162 = vpop.permute.xlu0 %1161
      %v1164 = vmul.f32 %v1134, %v267
      %v1165 = vmul.f32 %v1138, %v267
      %v1166 = vmul.f32 %v1142, %v267
      %v1167 = vmul.f32 %v1146, %v267
      %v1168 = vmul.f32 %v1150, %v267
      %v1169 = vmul.f32 %v1154, %v267
      %v1170 = vmul.f32 %v1158, %v267
      %v1171 = vmul.f32 %v1162, %v267
      %v1172 = vsub.f32 %v1124, %v1164
      %v1173 = vsub.f32 %v1125, %v1165
      %v1174 = vsub.f32 %v1126, %v1166
      %v1175 = vsub.f32 %v1127, %v1167
      %v1176 = vsub.f32 %v1128, %v1168
      %v1177 = vsub.f32 %v1129, %v1169
      %v1178 = vsub.f32 %v1130, %v1170
      %v1179 = vsub.f32 %v1131, %v1171
      %1180 = vset.pattern.permute.xlu0 2
      %1181 = vperm.xlu0 %1180, %v1076
      %v1182 = vpop.permute.xlu0 %1181
      %1184 = vset.pattern.permute.xlu0 2
      %1185 = vperm.xlu0 %1184, %v1077
      %v1186 = vpop.permute.xlu0 %1185
      %1188 = vset.pattern.permute.xlu0 2
      %1189 = vperm.xlu0 %1188, %v1078
      %v1190 = vpop.permute.xlu0 %1189
      %1192 = vset.pattern.permute.xlu0 2
      %1193 = vperm.xlu0 %1192, %v1079
      %v1194 = vpop.permute.xlu0 %1193
      %1196 = vset.pattern.permute.xlu0 2
      %1197 = vperm.xlu0 %1196, %v1080
      %v1198 = vpop.permute.xlu0 %1197
      %1200 = vset.pattern.permute.xlu0 2
      %1201 = vperm.xlu0 %1200, %v1081
      %v1202 = vpop.permute.xlu0 %1201
      %1204 = vset.pattern.permute.xlu0 2
      %1205 = vperm.xlu0 %1204, %v1082
      %v1206 = vpop.permute.xlu0 %1205
      %1208 = vset.pattern.permute.xlu0 2
      %1209 = vperm.xlu0 %1208, %v1083
      %v1210 = vpop.permute.xlu0 %1209
      %v1212 = vadd.f32 %v1172, %v1182
      %v1213 = vadd.f32 %v1173, %v1186
      %v1214 = vadd.f32 %v1174, %v1190
      %v1215 = vadd.f32 %v1175, %v1194
      %v1216 = vadd.f32 %v1176, %v1198
      %v1217 = vadd.f32 %v1177, %v1202
      %v1218 = vadd.f32 %v1178, %v1206
      %v1219 = vadd.f32 %v1179, %v1210
      %v1220 = vmul.f32 %v1134, %v226
      %v1221 = vmul.f32 %v1138, %v226
      %v1222 = vmul.f32 %v1142, %v226
      %v1223 = vmul.f32 %v1146, %v226
      %v1224 = vmul.f32 %v1150, %v226
      %v1225 = vmul.f32 %v1154, %v226
      %v1226 = vmul.f32 %v1158, %v226
      %v1227 = vmul.f32 %v1162, %v226
      %v1228 = vmul.f32 %v1087, %v267
      %v1229 = vmul.f32 %v1092, %v267
      %v1230 = vmul.f32 %v1097, %v267
      %v1231 = vmul.f32 %v1102, %v267
      %v1232 = vmul.f32 %v1107, %v267
      %v1233 = vmul.f32 %v1112, %v267
      %v1234 = vmul.f32 %v1117, %v267
      %v1235 = vmul.f32 %v1122, %v267
      %v1236 = vadd.f32 %v1220, %v1228
      %v1237 = vadd.f32 %v1221, %v1229
      %v1238 = vadd.f32 %v1222, %v1230
      %v1239 = vadd.f32 %v1223, %v1231
      %v1240 = vadd.f32 %v1224, %v1232
      %v1241 = vadd.f32 %v1225, %v1233
      %v1242 = vadd.f32 %v1226, %v1234
      %v1243 = vadd.f32 %v1227, %v1235
      %1244 = vset.pattern.permute.xlu0 3
      %1245 = vperm.xlu0 %1244, %v1076
      %v1246 = vpop.permute.xlu0 %1245
      %1248 = vset.pattern.permute.xlu0 3
      %1249 = vperm.xlu0 %1248, %v1077
      %v1250 = vpop.permute.xlu0 %1249
      %1252 = vset.pattern.permute.xlu0 3
      %1253 = vperm.xlu0 %1252, %v1078
      %v1254 = vpop.permute.xlu0 %1253
      %1256 = vset.pattern.permute.xlu0 3
      %1257 = vperm.xlu0 %1256, %v1079
      %v1258 = vpop.permute.xlu0 %1257
      %1260 = vset.pattern.permute.xlu0 3
      %1261 = vperm.xlu0 %1260, %v1080
      %v1262 = vpop.permute.xlu0 %1261
      %1264 = vset.pattern.permute.xlu0 3
      %1265 = vperm.xlu0 %1264, %v1081
      %v1266 = vpop.permute.xlu0 %1265
      %1268 = vset.pattern.permute.xlu0 3
      %1269 = vperm.xlu0 %1268, %v1082
      %v1270 = vpop.permute.xlu0 %1269
      %1272 = vset.pattern.permute.xlu0 3
      %1273 = vperm.xlu0 %1272, %v1083
      %v1274 = vpop.permute.xlu0 %1273
      %v1276 = vadd.f32 %v1236, %v1246
      %v1277 = vadd.f32 %v1237, %v1250
      %v1278 = vadd.f32 %v1238, %v1254
      %v1279 = vadd.f32 %v1239, %v1258
      %v1280 = vadd.f32 %v1240, %v1262
      %v1281 = vadd.f32 %v1241, %v1266
      %v1282 = vadd.f32 %v1242, %v1270
      %v1283 = vadd.f32 %v1243, %v1274
      %v1284 = vsub.f32 %v388, %v1212
      %v1285 = vsub.f32 %v388, %v1213
      %v1286 = vsub.f32 %v388, %v1214
      %v1287 = vsub.f32 %v388, %v1215
      %v1288 = vsub.f32 %v388, %v1216
      %v1289 = vsub.f32 %v388, %v1217
      %v1290 = vsub.f32 %v388, %v1218
      %v1291 = vsub.f32 %v388, %v1219
      %v1292 = vsub.f32 %v397, %v1276
      %v1293 = vsub.f32 %v397, %v1277
      %v1294 = vsub.f32 %v397, %v1278
      %v1295 = vsub.f32 %v397, %v1279
      %v1296 = vsub.f32 %v397, %v1280
      %v1297 = vsub.f32 %v397, %v1281
      %v1298 = vsub.f32 %v397, %v1282
      %v1299 = vsub.f32 %v397, %v1283
      %v1300 = vmul.f32 %v1284, %v1284
      %v1301 = vmul.f32 %v1285, %v1285
      %v1302 = vmul.f32 %v1286, %v1286
      %v1303 = vmul.f32 %v1287, %v1287
      %v1304 = vmul.f32 %v1288, %v1288
      %v1305 = vmul.f32 %v1289, %v1289
      %v1306 = vmul.f32 %v1290, %v1290
      %v1307 = vmul.f32 %v1291, %v1291
      %v1308 = vmul.f32 %v1292, %v1292
      %v1309 = vmul.f32 %v1293, %v1293
      %v1310 = vmul.f32 %v1294, %v1294
      %v1311 = vmul.f32 %v1295, %v1295
      %v1312 = vmul.f32 %v1296, %v1296
      %v1313 = vmul.f32 %v1297, %v1297
      %v1314 = vmul.f32 %v1298, %v1298
      %v1315 = vmul.f32 %v1299, %v1299
      %v1316 = vadd.f32 %v1300, %v1308
      %v1317 = vadd.f32 %v1301, %v1309
      %v1318 = vadd.f32 %v1302, %v1310
      %v1319 = vadd.f32 %v1303, %v1311
      %v1320 = vadd.f32 %v1304, %v1312
      %v1321 = vadd.f32 %v1305, %v1313
      %v1322 = vadd.f32 %v1306, %v1314
      %v1323 = vadd.f32 %v1307, %v1315
      %vm1324 = vcmp.le.f32.partialorder %v1316, 100.0
      %vm1325 = vcmp.le.f32.partialorder %v1317, 100.0
      %vm1326 = vcmp.le.f32.partialorder %v1318, 100.0
      %vm1327 = vcmp.le.f32.partialorder %v1319, 100.0
      %vm1328 = vcmp.le.f32.partialorder %v1320, 100.0
      %vm1329 = vcmp.le.f32.partialorder %v1321, 100.0
      %vm1330 = vcmp.le.f32.partialorder %v1322, 100.0
      %vm1331 = vcmp.le.f32.partialorder %v1323, 100.0
      %v1332 = vsel %vm1324, 1, 0
      %v1333 = vsel %vm1325, 1, 0
      %v1334 = vsel %vm1326, 1, 0
      %v1335 = vsel %vm1327, 1, 0
      %v1336 = vsel %vm1328, 1, 0
      %v1337 = vsel %vm1329, 1, 0
      %v1338 = vsel %vm1330, 1, 0
      %v1339 = vsel %vm1331, 1, 0
      %v1340 = vcvt.s32.f32 %v1332
      %v1341 = vcvt.s32.f32 %v1333
      %v1342 = vcvt.s32.f32 %v1334
      %v1343 = vcvt.s32.f32 %v1335
      %v1344 = vcvt.s32.f32 %v1336
      %v1345 = vcvt.s32.f32 %v1337
      %v1346 = vcvt.s32.f32 %v1338
      %v1347 = vcvt.s32.f32 %v1339
      %1348 = vadd.xlane.f32.xlu0 %v1340
      %v1349 = vpop.xlane.xlu0 %1348
      %1350 = vadd.xlane.f32.xlu0 %v1341
      %v1351 = vpop.xlane.xlu0 %1350
      %1352 = vadd.xlane.f32.xlu0 %v1342
      %v1353 = vpop.xlane.xlu0 %1352
      %1354 = vadd.xlane.f32.xlu0 %v1343
      %v1355 = vpop.xlane.xlu0 %1354
      %1356 = vadd.xlane.f32.xlu0 %v1344
      %v1357 = vpop.xlane.xlu0 %1356
      %1358 = vadd.xlane.f32.xlu0 %v1345
      %v1359 = vpop.xlane.xlu0 %1358
      %1360 = vadd.xlane.f32.xlu0 %v1346
      %v1361 = vpop.xlane.xlu0 %1360
      %1362 = vadd.xlane.f32.xlu0 %v1347
      %v1363 = vpop.xlane.xlu0 %1362
      %s1364 = scalar_lea.vmem %s172, 192
      %1365 = vst.msk [vmem:[%s1364] sm:$0xff] %vm470, %v1349
      %1366 = vst.msk [vmem:[%s1364 + $0x8] sm:$0xff] %vm470, %v1351
      %1367 = vst.msk [vmem:[%s1364 + $0x10] sm:$0xff] %vm470, %v1353
      %1368 = vst.msk [vmem:[%s1364 + $0x18] sm:$0xff] %vm470, %v1355
      %1369 = vst.msk [vmem:[%s1364 + $0x20] sm:$0xff] %vm470, %v1357
      %1370 = vst.msk [vmem:[%s1364 + $0x28] sm:$0xff] %vm470, %v1359
      %1371 = vst.msk [vmem:[%s1364 + $0x30] sm:$0xff] %vm470, %v1361
      %1372 = vst.msk [vmem:[%s1364 + $0x38] sm:$0xff] %vm470, %v1363
      %s1373 = scalar_lea.vmem %s166, 256
      %v1374 = vld [vmem:[%s1373] sm:$0xff]
      %v1375 = vld [vmem:[%s1373 + $0x8] sm:$0xff]
      %v1376 = vld [vmem:[%s1373 + $0x10] sm:$0xff]
      %v1377 = vld [vmem:[%s1373 + $0x18] sm:$0xff]
      %v1378 = vld [vmem:[%s1373 + $0x20] sm:$0xff]
      %v1379 = vld [vmem:[%s1373 + $0x28] sm:$0xff]
      %v1380 = vld [vmem:[%s1373 + $0x30] sm:$0xff]
      %v1381 = vld [vmem:[%s1373 + $0x38] sm:$0xff]
      %1383 = vset.pattern.permute.xlu0 0
      %1384 = vperm.xlu0 %1383, %v1374
      %v1385 = vpop.permute.xlu0 %1384
      %1388 = vset.pattern.permute.xlu0 0
      %1389 = vperm.xlu0 %1388, %v1375
      %v1390 = vpop.permute.xlu0 %1389
      %1393 = vset.pattern.permute.xlu0 0
      %1394 = vperm.xlu0 %1393, %v1376
      %v1395 = vpop.permute.xlu0 %1394
      %1398 = vset.pattern.permute.xlu0 0
      %1399 = vperm.xlu0 %1398, %v1377
      %v1400 = vpop.permute.xlu0 %1399
      %1403 = vset.pattern.permute.xlu0 0
      %1404 = vperm.xlu0 %1403, %v1378
      %v1405 = vpop.permute.xlu0 %1404
      %1408 = vset.pattern.permute.xlu0 0
      %1409 = vperm.xlu0 %1408, %v1379
      %v1410 = vpop.permute.xlu0 %1409
      %1413 = vset.pattern.permute.xlu0 0
      %1414 = vperm.xlu0 %1413, %v1380
      %v1415 = vpop.permute.xlu0 %1414
      %1418 = vset.pattern.permute.xlu0 0
      %1419 = vperm.xlu0 %1418, %v1381
      %v1420 = vpop.permute.xlu0 %1419
      %v1422 = vmul.f32 %v1385, %v226
      %v1423 = vmul.f32 %v1390, %v226
      %v1424 = vmul.f32 %v1395, %v226
      %v1425 = vmul.f32 %v1400, %v226
      %v1426 = vmul.f32 %v1405, %v226
      %v1427 = vmul.f32 %v1410, %v226
      %v1428 = vmul.f32 %v1415, %v226
      %v1429 = vmul.f32 %v1420, %v226
      %1430 = vset.pattern.permute.xlu0 1
      %1431 = vperm.xlu0 %1430, %v1374
      %v1432 = vpop.permute.xlu0 %1431
      %1434 = vset.pattern.permute.xlu0 1
      %1435 = vperm.xlu0 %1434, %v1375
      %v1436 = vpop.permute.xlu0 %1435
      %1438 = vset.pattern.permute.xlu0 1
      %1439 = vperm.xlu0 %1438, %v1376
      %v1440 = vpop.permute.xlu0 %1439
      %1442 = vset.pattern.permute.xlu0 1
      %1443 = vperm.xlu0 %1442, %v1377
      %v1444 = vpop.permute.xlu0 %1443
      %1446 = vset.pattern.permute.xlu0 1
      %1447 = vperm.xlu0 %1446, %v1378
      %v1448 = vpop.permute.xlu0 %1447
      %1450 = vset.pattern.permute.xlu0 1
      %1451 = vperm.xlu0 %1450, %v1379
      %v1452 = vpop.permute.xlu0 %1451
      %1454 = vset.pattern.permute.xlu0 1
      %1455 = vperm.xlu0 %1454, %v1380
      %v1456 = vpop.permute.xlu0 %1455
      %1458 = vset.pattern.permute.xlu0 1
      %1459 = vperm.xlu0 %1458, %v1381
      %v1460 = vpop.permute.xlu0 %1459
      %v1462 = vmul.f32 %v1432, %v267
      %v1463 = vmul.f32 %v1436, %v267
      %v1464 = vmul.f32 %v1440, %v267
      %v1465 = vmul.f32 %v1444, %v267
      %v1466 = vmul.f32 %v1448, %v267
      %v1467 = vmul.f32 %v1452, %v267
      %v1468 = vmul.f32 %v1456, %v267
      %v1469 = vmul.f32 %v1460, %v267
      %v1470 = vsub.f32 %v1422, %v1462
      %v1471 = vsub.f32 %v1423, %v1463
      %v1472 = vsub.f32 %v1424, %v1464
      %v1473 = vsub.f32 %v1425, %v1465
      %v1474 = vsub.f32 %v1426, %v1466
      %v1475 = vsub.f32 %v1427, %v1467
      %v1476 = vsub.f32 %v1428, %v1468
      %v1477 = vsub.f32 %v1429, %v1469
      %1478 = vset.pattern.permute.xlu0 2
      %1479 = vperm.xlu0 %1478, %v1374
      %v1480 = vpop.permute.xlu0 %1479
      %1482 = vset.pattern.permute.xlu0 2
      %1483 = vperm.xlu0 %1482, %v1375
      %v1484 = vpop.permute.xlu0 %1483
      %1486 = vset.pattern.permute.xlu0 2
      %1487 = vperm.xlu0 %1486, %v1376
      %v1488 = vpop.permute.xlu0 %1487
      %1490 = vset.pattern.permute.xlu0 2
      %1491 = vperm.xlu0 %1490, %v1377
      %v1492 = vpop.permute.xlu0 %1491
      %1494 = vset.pattern.permute.xlu0 2
      %1495 = vperm.xlu0 %1494, %v1378
      %v1496 = vpop.permute.xlu0 %1495
      %1498 = vset.pattern.permute.xlu0 2
      %1499 = vperm.xlu0 %1498, %v1379
      %v1500 = vpop.permute.xlu0 %1499
      %1502 = vset.pattern.permute.xlu0 2
      %1503 = vperm.xlu0 %1502, %v1380
      %v1504 = vpop.permute.xlu0 %1503
      %1506 = vset.pattern.permute.xlu0 2
      %1507 = vperm.xlu0 %1506, %v1381
      %v1508 = vpop.permute.xlu0 %1507
      %v1510 = vadd.f32 %v1470, %v1480
      %v1511 = vadd.f32 %v1471, %v1484
      %v1512 = vadd.f32 %v1472, %v1488
      %v1513 = vadd.f32 %v1473, %v1492
      %v1514 = vadd.f32 %v1474, %v1496
      %v1515 = vadd.f32 %v1475, %v1500
      %v1516 = vadd.f32 %v1476, %v1504
      %v1517 = vadd.f32 %v1477, %v1508
      %v1518 = vmul.f32 %v1432, %v226
      %v1519 = vmul.f32 %v1436, %v226
      %v1520 = vmul.f32 %v1440, %v226
      %v1521 = vmul.f32 %v1444, %v226
      %v1522 = vmul.f32 %v1448, %v226
      %v1523 = vmul.f32 %v1452, %v226
      %v1524 = vmul.f32 %v1456, %v226
      %v1525 = vmul.f32 %v1460, %v226
      %v1526 = vmul.f32 %v1385, %v267
      %v1527 = vmul.f32 %v1390, %v267
      %v1528 = vmul.f32 %v1395, %v267
      %v1529 = vmul.f32 %v1400, %v267
      %v1530 = vmul.f32 %v1405, %v267
      %v1531 = vmul.f32 %v1410, %v267
      %v1532 = vmul.f32 %v1415, %v267
      %v1533 = vmul.f32 %v1420, %v267
      %v1534 = vadd.f32 %v1518, %v1526
      %v1535 = vadd.f32 %v1519, %v1527
      %v1536 = vadd.f32 %v1520, %v1528
      %v1537 = vadd.f32 %v1521, %v1529
      %v1538 = vadd.f32 %v1522, %v1530
      %v1539 = vadd.f32 %v1523, %v1531
      %v1540 = vadd.f32 %v1524, %v1532
      %v1541 = vadd.f32 %v1525, %v1533
      %1542 = vset.pattern.permute.xlu0 3
      %1543 = vperm.xlu0 %1542, %v1374
      %v1544 = vpop.permute.xlu0 %1543
      %1546 = vset.pattern.permute.xlu0 3
      %1547 = vperm.xlu0 %1546, %v1375
      %v1548 = vpop.permute.xlu0 %1547
      %1550 = vset.pattern.permute.xlu0 3
      %1551 = vperm.xlu0 %1550, %v1376
      %v1552 = vpop.permute.xlu0 %1551
      %1554 = vset.pattern.permute.xlu0 3
      %1555 = vperm.xlu0 %1554, %v1377
      %v1556 = vpop.permute.xlu0 %1555
      %1558 = vset.pattern.permute.xlu0 3
      %1559 = vperm.xlu0 %1558, %v1378
      %v1560 = vpop.permute.xlu0 %1559
      %1562 = vset.pattern.permute.xlu0 3
      %1563 = vperm.xlu0 %1562, %v1379
      %v1564 = vpop.permute.xlu0 %1563
      %1566 = vset.pattern.permute.xlu0 3
      %1567 = vperm.xlu0 %1566, %v1380
      %v1568 = vpop.permute.xlu0 %1567
      %1570 = vset.pattern.permute.xlu0 3
      %1571 = vperm.xlu0 %1570, %v1381
      %v1572 = vpop.permute.xlu0 %1571
      %v1574 = vadd.f32 %v1534, %v1544
      %v1575 = vadd.f32 %v1535, %v1548
      %v1576 = vadd.f32 %v1536, %v1552
      %v1577 = vadd.f32 %v1537, %v1556
      %v1578 = vadd.f32 %v1538, %v1560
      %v1579 = vadd.f32 %v1539, %v1564
      %v1580 = vadd.f32 %v1540, %v1568
      %v1581 = vadd.f32 %v1541, %v1572
      %v1582 = vsub.f32 %v388, %v1510
      %v1583 = vsub.f32 %v388, %v1511
      %v1584 = vsub.f32 %v388, %v1512
      %v1585 = vsub.f32 %v388, %v1513
      %v1586 = vsub.f32 %v388, %v1514
      %v1587 = vsub.f32 %v388, %v1515
      %v1588 = vsub.f32 %v388, %v1516
      %v1589 = vsub.f32 %v388, %v1517
      %v1590 = vsub.f32 %v397, %v1574
      %v1591 = vsub.f32 %v397, %v1575
      %v1592 = vsub.f32 %v397, %v1576
      %v1593 = vsub.f32 %v397, %v1577
      %v1594 = vsub.f32 %v397, %v1578
      %v1595 = vsub.f32 %v397, %v1579
      %v1596 = vsub.f32 %v397, %v1580
      %v1597 = vsub.f32 %v397, %v1581
      %v1598 = vmul.f32 %v1582, %v1582
      %v1599 = vmul.f32 %v1583, %v1583
      %v1600 = vmul.f32 %v1584, %v1584
      %v1601 = vmul.f32 %v1585, %v1585
      %v1602 = vmul.f32 %v1586, %v1586
      %v1603 = vmul.f32 %v1587, %v1587
      %v1604 = vmul.f32 %v1588, %v1588
      %v1605 = vmul.f32 %v1589, %v1589
      %v1606 = vmul.f32 %v1590, %v1590
      %v1607 = vmul.f32 %v1591, %v1591
      %v1608 = vmul.f32 %v1592, %v1592
      %v1609 = vmul.f32 %v1593, %v1593
      %v1610 = vmul.f32 %v1594, %v1594
      %v1611 = vmul.f32 %v1595, %v1595
      %v1612 = vmul.f32 %v1596, %v1596
      %v1613 = vmul.f32 %v1597, %v1597
      %v1614 = vadd.f32 %v1598, %v1606
      %v1615 = vadd.f32 %v1599, %v1607
      %v1616 = vadd.f32 %v1600, %v1608
      %v1617 = vadd.f32 %v1601, %v1609
      %v1618 = vadd.f32 %v1602, %v1610
      %v1619 = vadd.f32 %v1603, %v1611
      %v1620 = vadd.f32 %v1604, %v1612
      %v1621 = vadd.f32 %v1605, %v1613
      %vm1622 = vcmp.le.f32.partialorder %v1614, 100.0
      %vm1623 = vcmp.le.f32.partialorder %v1615, 100.0
      %vm1624 = vcmp.le.f32.partialorder %v1616, 100.0
      %vm1625 = vcmp.le.f32.partialorder %v1617, 100.0
      %vm1626 = vcmp.le.f32.partialorder %v1618, 100.0
      %vm1627 = vcmp.le.f32.partialorder %v1619, 100.0
      %vm1628 = vcmp.le.f32.partialorder %v1620, 100.0
      %vm1629 = vcmp.le.f32.partialorder %v1621, 100.0
      %v1630 = vsel %vm1622, 1, 0
      %v1631 = vsel %vm1623, 1, 0
      %v1632 = vsel %vm1624, 1, 0
      %v1633 = vsel %vm1625, 1, 0
      %v1634 = vsel %vm1626, 1, 0
      %v1635 = vsel %vm1627, 1, 0
      %v1636 = vsel %vm1628, 1, 0
      %v1637 = vsel %vm1629, 1, 0
      %v1638 = vcvt.s32.f32 %v1630
      %v1639 = vcvt.s32.f32 %v1631
      %v1640 = vcvt.s32.f32 %v1632
      %v1641 = vcvt.s32.f32 %v1633
      %v1642 = vcvt.s32.f32 %v1634
      %v1643 = vcvt.s32.f32 %v1635
      %v1644 = vcvt.s32.f32 %v1636
      %v1645 = vcvt.s32.f32 %v1637
      %1646 = vadd.xlane.f32.xlu0 %v1638
      %v1647 = vpop.xlane.xlu0 %1646
      %1648 = vadd.xlane.f32.xlu0 %v1639
      %v1649 = vpop.xlane.xlu0 %1648
      %1650 = vadd.xlane.f32.xlu0 %v1640
      %v1651 = vpop.xlane.xlu0 %1650
      %1652 = vadd.xlane.f32.xlu0 %v1641
      %v1653 = vpop.xlane.xlu0 %1652
      %1654 = vadd.xlane.f32.xlu0 %v1642
      %v1655 = vpop.xlane.xlu0 %1654
      %1656 = vadd.xlane.f32.xlu0 %v1643
      %v1657 = vpop.xlane.xlu0 %1656
      %1658 = vadd.xlane.f32.xlu0 %v1644
      %v1659 = vpop.xlane.xlu0 %1658
      %1660 = vadd.xlane.f32.xlu0 %v1645
      %v1661 = vpop.xlane.xlu0 %1660
      %s1662 = scalar_lea.vmem %s172, 256
      %1663 = vst.msk [vmem:[%s1662] sm:$0xff] %vm470, %v1647
      %1664 = vst.msk [vmem:[%s1662 + $0x8] sm:$0xff] %vm470, %v1649
      %1665 = vst.msk [vmem:[%s1662 + $0x10] sm:$0xff] %vm470, %v1651
      %1666 = vst.msk [vmem:[%s1662 + $0x18] sm:$0xff] %vm470, %v1653
      %1667 = vst.msk [vmem:[%s1662 + $0x20] sm:$0xff] %vm470, %v1655
      %1668 = vst.msk [vmem:[%s1662 + $0x28] sm:$0xff] %vm470, %v1657
      %1669 = vst.msk [vmem:[%s1662 + $0x30] sm:$0xff] %vm470, %v1659
      %1670 = vst.msk [vmem:[%s1662 + $0x38] sm:$0xff] %vm470, %v1661
      %s1671 = scalar_lea.vmem %s166, 320
      %v1672 = vld [vmem:[%s1671] sm:$0xff]
      %v1673 = vld [vmem:[%s1671 + $0x8] sm:$0xff]
      %v1674 = vld [vmem:[%s1671 + $0x10] sm:$0xff]
      %v1675 = vld [vmem:[%s1671 + $0x18] sm:$0xff]
      %v1676 = vld [vmem:[%s1671 + $0x20] sm:$0xff]
      %v1677 = vld [vmem:[%s1671 + $0x28] sm:$0xff]
      %v1678 = vld [vmem:[%s1671 + $0x30] sm:$0xff]
      %v1679 = vld [vmem:[%s1671 + $0x38] sm:$0xff]
      %1681 = vset.pattern.permute.xlu0 0
      %1682 = vperm.xlu0 %1681, %v1672
      %v1683 = vpop.permute.xlu0 %1682
      %1686 = vset.pattern.permute.xlu0 0
      %1687 = vperm.xlu0 %1686, %v1673
      %v1688 = vpop.permute.xlu0 %1687
      %1691 = vset.pattern.permute.xlu0 0
      %1692 = vperm.xlu0 %1691, %v1674
      %v1693 = vpop.permute.xlu0 %1692
      %1696 = vset.pattern.permute.xlu0 0
      %1697 = vperm.xlu0 %1696, %v1675
      %v1698 = vpop.permute.xlu0 %1697
      %1701 = vset.pattern.permute.xlu0 0
      %1702 = vperm.xlu0 %1701, %v1676
      %v1703 = vpop.permute.xlu0 %1702
      %1706 = vset.pattern.permute.xlu0 0
      %1707 = vperm.xlu0 %1706, %v1677
      %v1708 = vpop.permute.xlu0 %1707
      %1711 = vset.pattern.permute.xlu0 0
      %1712 = vperm.xlu0 %1711, %v1678
      %v1713 = vpop.permute.xlu0 %1712
      %1716 = vset.pattern.permute.xlu0 0
      %1717 = vperm.xlu0 %1716, %v1679
      %v1718 = vpop.permute.xlu0 %1717
      %v1720 = vmul.f32 %v1683, %v226
      %v1721 = vmul.f32 %v1688, %v226
      %v1722 = vmul.f32 %v1693, %v226
      %v1723 = vmul.f32 %v1698, %v226
      %v1724 = vmul.f32 %v1703, %v226
      %v1725 = vmul.f32 %v1708, %v226
      %v1726 = vmul.f32 %v1713, %v226
      %v1727 = vmul.f32 %v1718, %v226
      %1728 = vset.pattern.permute.xlu0 1
      %1729 = vperm.xlu0 %1728, %v1672
      %v1730 = vpop.permute.xlu0 %1729
      %1732 = vset.pattern.permute.xlu0 1
      %1733 = vperm.xlu0 %1732, %v1673
      %v1734 = vpop.permute.xlu0 %1733
      %1736 = vset.pattern.permute.xlu0 1
      %1737 = vperm.xlu0 %1736, %v1674
      %v1738 = vpop.permute.xlu0 %1737
      %1740 = vset.pattern.permute.xlu0 1
      %1741 = vperm.xlu0 %1740, %v1675
      %v1742 = vpop.permute.xlu0 %1741
      %1744 = vset.pattern.permute.xlu0 1
      %1745 = vperm.xlu0 %1744, %v1676
      %v1746 = vpop.permute.xlu0 %1745
      %1748 = vset.pattern.permute.xlu0 1
      %1749 = vperm.xlu0 %1748, %v1677
      %v1750 = vpop.permute.xlu0 %1749
      %1752 = vset.pattern.permute.xlu0 1
      %1753 = vperm.xlu0 %1752, %v1678
      %v1754 = vpop.permute.xlu0 %1753
      %1756 = vset.pattern.permute.xlu0 1
      %1757 = vperm.xlu0 %1756, %v1679
      %v1758 = vpop.permute.xlu0 %1757
      %v1760 = vmul.f32 %v1730, %v267
      %v1761 = vmul.f32 %v1734, %v267
      %v1762 = vmul.f32 %v1738, %v267
      %v1763 = vmul.f32 %v1742, %v267
      %v1764 = vmul.f32 %v1746, %v267
      %v1765 = vmul.f32 %v1750, %v267
      %v1766 = vmul.f32 %v1754, %v267
      %v1767 = vmul.f32 %v1758, %v267
      %v1768 = vsub.f32 %v1720, %v1760
      %v1769 = vsub.f32 %v1721, %v1761
      %v1770 = vsub.f32 %v1722, %v1762
      %v1771 = vsub.f32 %v1723, %v1763
      %v1772 = vsub.f32 %v1724, %v1764
      %v1773 = vsub.f32 %v1725, %v1765
      %v1774 = vsub.f32 %v1726, %v1766
      %v1775 = vsub.f32 %v1727, %v1767
      %1776 = vset.pattern.permute.xlu0 2
      %1777 = vperm.xlu0 %1776, %v1672
      %v1778 = vpop.permute.xlu0 %1777
      %1780 = vset.pattern.permute.xlu0 2
      %1781 = vperm.xlu0 %1780, %v1673
      %v1782 = vpop.permute.xlu0 %1781
      %1784 = vset.pattern.permute.xlu0 2
      %1785 = vperm.xlu0 %1784, %v1674
      %v1786 = vpop.permute.xlu0 %1785
      %1788 = vset.pattern.permute.xlu0 2
      %1789 = vperm.xlu0 %1788, %v1675
      %v1790 = vpop.permute.xlu0 %1789
      %1792 = vset.pattern.permute.xlu0 2
      %1793 = vperm.xlu0 %1792, %v1676
      %v1794 = vpop.permute.xlu0 %1793
      %1796 = vset.pattern.permute.xlu0 2
      %1797 = vperm.xlu0 %1796, %v1677
      %v1798 = vpop.permute.xlu0 %1797
      %1800 = vset.pattern.permute.xlu0 2
      %1801 = vperm.xlu0 %1800, %v1678
      %v1802 = vpop.permute.xlu0 %1801
      %1804 = vset.pattern.permute.xlu0 2
      %1805 = vperm.xlu0 %1804, %v1679
      %v1806 = vpop.permute.xlu0 %1805
      %v1808 = vadd.f32 %v1768, %v1778
      %v1809 = vadd.f32 %v1769, %v1782
      %v1810 = vadd.f32 %v1770, %v1786
      %v1811 = vadd.f32 %v1771, %v1790
      %v1812 = vadd.f32 %v1772, %v1794
      %v1813 = vadd.f32 %v1773, %v1798
      %v1814 = vadd.f32 %v1774, %v1802
      %v1815 = vadd.f32 %v1775, %v1806
      %v1816 = vmul.f32 %v1730, %v226
      %v1817 = vmul.f32 %v1734, %v226
      %v1818 = vmul.f32 %v1738, %v226
      %v1819 = vmul.f32 %v1742, %v226
      %v1820 = vmul.f32 %v1746, %v226
      %v1821 = vmul.f32 %v1750, %v226
      %v1822 = vmul.f32 %v1754, %v226
      %v1823 = vmul.f32 %v1758, %v226
      %v1824 = vmul.f32 %v1683, %v267
      %v1825 = vmul.f32 %v1688, %v267
      %v1826 = vmul.f32 %v1693, %v267
      %v1827 = vmul.f32 %v1698, %v267
      %v1828 = vmul.f32 %v1703, %v267
      %v1829 = vmul.f32 %v1708, %v267
      %v1830 = vmul.f32 %v1713, %v267
      %v1831 = vmul.f32 %v1718, %v267
      %v1832 = vadd.f32 %v1816, %v1824
      %v1833 = vadd.f32 %v1817, %v1825
      %v1834 = vadd.f32 %v1818, %v1826
      %v1835 = vadd.f32 %v1819, %v1827
      %v1836 = vadd.f32 %v1820, %v1828
      %v1837 = vadd.f32 %v1821, %v1829
      %v1838 = vadd.f32 %v1822, %v1830
      %v1839 = vadd.f32 %v1823, %v1831
      %1840 = vset.pattern.permute.xlu0 3
      %1841 = vperm.xlu0 %1840, %v1672
      %v1842 = vpop.permute.xlu0 %1841
      %1844 = vset.pattern.permute.xlu0 3
      %1845 = vperm.xlu0 %1844, %v1673
      %v1846 = vpop.permute.xlu0 %1845
      %1848 = vset.pattern.permute.xlu0 3
      %1849 = vperm.xlu0 %1848, %v1674
      %v1850 = vpop.permute.xlu0 %1849
      %1852 = vset.pattern.permute.xlu0 3
      %1853 = vperm.xlu0 %1852, %v1675
      %v1854 = vpop.permute.xlu0 %1853
      %1856 = vset.pattern.permute.xlu0 3
      %1857 = vperm.xlu0 %1856, %v1676
      %v1858 = vpop.permute.xlu0 %1857
      %1860 = vset.pattern.permute.xlu0 3
      %1861 = vperm.xlu0 %1860, %v1677
      %v1862 = vpop.permute.xlu0 %1861
      %1864 = vset.pattern.permute.xlu0 3
      %1865 = vperm.xlu0 %1864, %v1678
      %v1866 = vpop.permute.xlu0 %1865
      %1868 = vset.pattern.permute.xlu0 3
      %1869 = vperm.xlu0 %1868, %v1679
      %v1870 = vpop.permute.xlu0 %1869
      %v1872 = vadd.f32 %v1832, %v1842
      %v1873 = vadd.f32 %v1833, %v1846
      %v1874 = vadd.f32 %v1834, %v1850
      %v1875 = vadd.f32 %v1835, %v1854
      %v1876 = vadd.f32 %v1836, %v1858
      %v1877 = vadd.f32 %v1837, %v1862
      %v1878 = vadd.f32 %v1838, %v1866
      %v1879 = vadd.f32 %v1839, %v1870
      %v1880 = vsub.f32 %v388, %v1808
      %v1881 = vsub.f32 %v388, %v1809
      %v1882 = vsub.f32 %v388, %v1810
      %v1883 = vsub.f32 %v388, %v1811
      %v1884 = vsub.f32 %v388, %v1812
      %v1885 = vsub.f32 %v388, %v1813
      %v1886 = vsub.f32 %v388, %v1814
      %v1887 = vsub.f32 %v388, %v1815
      %v1888 = vsub.f32 %v397, %v1872
      %v1889 = vsub.f32 %v397, %v1873
      %v1890 = vsub.f32 %v397, %v1874
      %v1891 = vsub.f32 %v397, %v1875
      %v1892 = vsub.f32 %v397, %v1876
      %v1893 = vsub.f32 %v397, %v1877
      %v1894 = vsub.f32 %v397, %v1878
      %v1895 = vsub.f32 %v397, %v1879
      %v1896 = vmul.f32 %v1880, %v1880
      %v1897 = vmul.f32 %v1881, %v1881
      %v1898 = vmul.f32 %v1882, %v1882
      %v1899 = vmul.f32 %v1883, %v1883
      %v1900 = vmul.f32 %v1884, %v1884
      %v1901 = vmul.f32 %v1885, %v1885
      %v1902 = vmul.f32 %v1886, %v1886
      %v1903 = vmul.f32 %v1887, %v1887
      %v1904 = vmul.f32 %v1888, %v1888
      %v1905 = vmul.f32 %v1889, %v1889
      %v1906 = vmul.f32 %v1890, %v1890
      %v1907 = vmul.f32 %v1891, %v1891
      %v1908 = vmul.f32 %v1892, %v1892
      %v1909 = vmul.f32 %v1893, %v1893
      %v1910 = vmul.f32 %v1894, %v1894
      %v1911 = vmul.f32 %v1895, %v1895
      %v1912 = vadd.f32 %v1896, %v1904
      %v1913 = vadd.f32 %v1897, %v1905
      %v1914 = vadd.f32 %v1898, %v1906
      %v1915 = vadd.f32 %v1899, %v1907
      %v1916 = vadd.f32 %v1900, %v1908
      %v1917 = vadd.f32 %v1901, %v1909
      %v1918 = vadd.f32 %v1902, %v1910
      %v1919 = vadd.f32 %v1903, %v1911
      %vm1920 = vcmp.le.f32.partialorder %v1912, 100.0
      %vm1921 = vcmp.le.f32.partialorder %v1913, 100.0
      %vm1922 = vcmp.le.f32.partialorder %v1914, 100.0
      %vm1923 = vcmp.le.f32.partialorder %v1915, 100.0
      %vm1924 = vcmp.le.f32.partialorder %v1916, 100.0
      %vm1925 = vcmp.le.f32.partialorder %v1917, 100.0
      %vm1926 = vcmp.le.f32.partialorder %v1918, 100.0
      %vm1927 = vcmp.le.f32.partialorder %v1919, 100.0
      %v1928 = vsel %vm1920, 1, 0
      %v1929 = vsel %vm1921, 1, 0
      %v1930 = vsel %vm1922, 1, 0
      %v1931 = vsel %vm1923, 1, 0
      %v1932 = vsel %vm1924, 1, 0
      %v1933 = vsel %vm1925, 1, 0
      %v1934 = vsel %vm1926, 1, 0
      %v1935 = vsel %vm1927, 1, 0
      %v1936 = vcvt.s32.f32 %v1928
      %v1937 = vcvt.s32.f32 %v1929
      %v1938 = vcvt.s32.f32 %v1930
      %v1939 = vcvt.s32.f32 %v1931
      %v1940 = vcvt.s32.f32 %v1932
      %v1941 = vcvt.s32.f32 %v1933
      %v1942 = vcvt.s32.f32 %v1934
      %v1943 = vcvt.s32.f32 %v1935
      %1944 = vadd.xlane.f32.xlu0 %v1936
      %v1945 = vpop.xlane.xlu0 %1944
      %1946 = vadd.xlane.f32.xlu0 %v1937
      %v1947 = vpop.xlane.xlu0 %1946
      %1948 = vadd.xlane.f32.xlu0 %v1938
      %v1949 = vpop.xlane.xlu0 %1948
      %1950 = vadd.xlane.f32.xlu0 %v1939
      %v1951 = vpop.xlane.xlu0 %1950
      %1952 = vadd.xlane.f32.xlu0 %v1940
      %v1953 = vpop.xlane.xlu0 %1952
      %1954 = vadd.xlane.f32.xlu0 %v1941
      %v1955 = vpop.xlane.xlu0 %1954
      %1956 = vadd.xlane.f32.xlu0 %v1942
      %v1957 = vpop.xlane.xlu0 %1956
      %1958 = vadd.xlane.f32.xlu0 %v1943
      %v1959 = vpop.xlane.xlu0 %1958
      %s1960 = scalar_lea.vmem %s172, 320
      %1961 = vst.msk [vmem:[%s1960] sm:$0xff] %vm470, %v1945
      %1962 = vst.msk [vmem:[%s1960 + $0x8] sm:$0xff] %vm470, %v1947
      %1963 = vst.msk [vmem:[%s1960 + $0x10] sm:$0xff] %vm470, %v1949
      %1964 = vst.msk [vmem:[%s1960 + $0x18] sm:$0xff] %vm470, %v1951
      %1965 = vst.msk [vmem:[%s1960 + $0x20] sm:$0xff] %vm470, %v1953
      %1966 = vst.msk [vmem:[%s1960 + $0x28] sm:$0xff] %vm470, %v1955
      %1967 = vst.msk [vmem:[%s1960 + $0x30] sm:$0xff] %vm470, %v1957
      %1968 = vst.msk [vmem:[%s1960 + $0x38] sm:$0xff] %vm470, %v1959
      %s1969 = scalar_lea.vmem %s166, 384
      %v1970 = vld [vmem:[%s1969] sm:$0xff]
      %v1971 = vld [vmem:[%s1969 + $0x8] sm:$0xff]
      %v1972 = vld [vmem:[%s1969 + $0x10] sm:$0xff]
      %v1973 = vld [vmem:[%s1969 + $0x18] sm:$0xff]
      %v1974 = vld [vmem:[%s1969 + $0x20] sm:$0xff]
      %v1975 = vld [vmem:[%s1969 + $0x28] sm:$0xff]
      %v1976 = vld [vmem:[%s1969 + $0x30] sm:$0xff]
      %v1977 = vld [vmem:[%s1969 + $0x38] sm:$0xff]
      %1979 = vset.pattern.permute.xlu0 0
      %1980 = vperm.xlu0 %1979, %v1970
      %v1981 = vpop.permute.xlu0 %1980
      %1984 = vset.pattern.permute.xlu0 0
      %1985 = vperm.xlu0 %1984, %v1971
      %v1986 = vpop.permute.xlu0 %1985
      %1989 = vset.pattern.permute.xlu0 0
      %1990 = vperm.xlu0 %1989, %v1972
      %v1991 = vpop.permute.xlu0 %1990
      %1994 = vset.pattern.permute.xlu0 0
      %1995 = vperm.xlu0 %1994, %v1973
      %v1996 = vpop.permute.xlu0 %1995
      %1999 = vset.pattern.permute.xlu0 0
      %2000 = vperm.xlu0 %1999, %v1974
      %v2001 = vpop.permute.xlu0 %2000
      %2004 = vset.pattern.permute.xlu0 0
      %2005 = vperm.xlu0 %2004, %v1975
      %v2006 = vpop.permute.xlu0 %2005
      %2009 = vset.pattern.permute.xlu0 0
      %2010 = vperm.xlu0 %2009, %v1976
      %v2011 = vpop.permute.xlu0 %2010
      %2014 = vset.pattern.permute.xlu0 0
      %2015 = vperm.xlu0 %2014, %v1977
      %v2016 = vpop.permute.xlu0 %2015
      %v2018 = vmul.f32 %v1981, %v226
      %v2019 = vmul.f32 %v1986, %v226
      %v2020 = vmul.f32 %v1991, %v226
      %v2021 = vmul.f32 %v1996, %v226
      %v2022 = vmul.f32 %v2001, %v226
      %v2023 = vmul.f32 %v2006, %v226
      %v2024 = vmul.f32 %v2011, %v226
      %v2025 = vmul.f32 %v2016, %v226
      %2026 = vset.pattern.permute.xlu0 1
      %2027 = vperm.xlu0 %2026, %v1970
      %v2028 = vpop.permute.xlu0 %2027
      %2030 = vset.pattern.permute.xlu0 1
      %2031 = vperm.xlu0 %2030, %v1971
      %v2032 = vpop.permute.xlu0 %2031
      %2034 = vset.pattern.permute.xlu0 1
      %2035 = vperm.xlu0 %2034, %v1972
      %v2036 = vpop.permute.xlu0 %2035
      %2038 = vset.pattern.permute.xlu0 1
      %2039 = vperm.xlu0 %2038, %v1973
      %v2040 = vpop.permute.xlu0 %2039
      %2042 = vset.pattern.permute.xlu0 1
      %2043 = vperm.xlu0 %2042, %v1974
      %v2044 = vpop.permute.xlu0 %2043
      %2046 = vset.pattern.permute.xlu0 1
      %2047 = vperm.xlu0 %2046, %v1975
      %v2048 = vpop.permute.xlu0 %2047
      %2050 = vset.pattern.permute.xlu0 1
      %2051 = vperm.xlu0 %2050, %v1976
      %v2052 = vpop.permute.xlu0 %2051
      %2054 = vset.pattern.permute.xlu0 1
      %2055 = vperm.xlu0 %2054, %v1977
      %v2056 = vpop.permute.xlu0 %2055
      %v2058 = vmul.f32 %v2028, %v267
      %v2059 = vmul.f32 %v2032, %v267
      %v2060 = vmul.f32 %v2036, %v267
      %v2061 = vmul.f32 %v2040, %v267
      %v2062 = vmul.f32 %v2044, %v267
      %v2063 = vmul.f32 %v2048, %v267
      %v2064 = vmul.f32 %v2052, %v267
      %v2065 = vmul.f32 %v2056, %v267
      %v2066 = vsub.f32 %v2018, %v2058
      %v2067 = vsub.f32 %v2019, %v2059
      %v2068 = vsub.f32 %v2020, %v2060
      %v2069 = vsub.f32 %v2021, %v2061
      %v2070 = vsub.f32 %v2022, %v2062
      %v2071 = vsub.f32 %v2023, %v2063
      %v2072 = vsub.f32 %v2024, %v2064
      %v2073 = vsub.f32 %v2025, %v2065
      %2074 = vset.pattern.permute.xlu0 2
      %2075 = vperm.xlu0 %2074, %v1970
      %v2076 = vpop.permute.xlu0 %2075
      %2078 = vset.pattern.permute.xlu0 2
      %2079 = vperm.xlu0 %2078, %v1971
      %v2080 = vpop.permute.xlu0 %2079
      %2082 = vset.pattern.permute.xlu0 2
      %2083 = vperm.xlu0 %2082, %v1972
      %v2084 = vpop.permute.xlu0 %2083
      %2086 = vset.pattern.permute.xlu0 2
      %2087 = vperm.xlu0 %2086, %v1973
      %v2088 = vpop.permute.xlu0 %2087
      %2090 = vset.pattern.permute.xlu0 2
      %2091 = vperm.xlu0 %2090, %v1974
      %v2092 = vpop.permute.xlu0 %2091
      %2094 = vset.pattern.permute.xlu0 2
      %2095 = vperm.xlu0 %2094, %v1975
      %v2096 = vpop.permute.xlu0 %2095
      %2098 = vset.pattern.permute.xlu0 2
      %2099 = vperm.xlu0 %2098, %v1976
      %v2100 = vpop.permute.xlu0 %2099
      %2102 = vset.pattern.permute.xlu0 2
      %2103 = vperm.xlu0 %2102, %v1977
      %v2104 = vpop.permute.xlu0 %2103
      %v2106 = vadd.f32 %v2066, %v2076
      %v2107 = vadd.f32 %v2067, %v2080
      %v2108 = vadd.f32 %v2068, %v2084
      %v2109 = vadd.f32 %v2069, %v2088
      %v2110 = vadd.f32 %v2070, %v2092
      %v2111 = vadd.f32 %v2071, %v2096
      %v2112 = vadd.f32 %v2072, %v2100
      %v2113 = vadd.f32 %v2073, %v2104
      %v2114 = vmul.f32 %v2028, %v226
      %v2115 = vmul.f32 %v2032, %v226
      %v2116 = vmul.f32 %v2036, %v226
      %v2117 = vmul.f32 %v2040, %v226
      %v2118 = vmul.f32 %v2044, %v226
      %v2119 = vmul.f32 %v2048, %v226
      %v2120 = vmul.f32 %v2052, %v226
      %v2121 = vmul.f32 %v2056, %v226
      %v2122 = vmul.f32 %v1981, %v267
      %v2123 = vmul.f32 %v1986, %v267
      %v2124 = vmul.f32 %v1991, %v267
      %v2125 = vmul.f32 %v1996, %v267
      %v2126 = vmul.f32 %v2001, %v267
      %v2127 = vmul.f32 %v2006, %v267
      %v2128 = vmul.f32 %v2011, %v267
      %v2129 = vmul.f32 %v2016, %v267
      %v2130 = vadd.f32 %v2114, %v2122
      %v2131 = vadd.f32 %v2115, %v2123
      %v2132 = vadd.f32 %v2116, %v2124
      %v2133 = vadd.f32 %v2117, %v2125
      %v2134 = vadd.f32 %v2118, %v2126
      %v2135 = vadd.f32 %v2119, %v2127
      %v2136 = vadd.f32 %v2120, %v2128
      %v2137 = vadd.f32 %v2121, %v2129
      %2138 = vset.pattern.permute.xlu0 3
      %2139 = vperm.xlu0 %2138, %v1970
      %v2140 = vpop.permute.xlu0 %2139
      %2142 = vset.pattern.permute.xlu0 3
      %2143 = vperm.xlu0 %2142, %v1971
      %v2144 = vpop.permute.xlu0 %2143
      %2146 = vset.pattern.permute.xlu0 3
      %2147 = vperm.xlu0 %2146, %v1972
      %v2148 = vpop.permute.xlu0 %2147
      %2150 = vset.pattern.permute.xlu0 3
      %2151 = vperm.xlu0 %2150, %v1973
      %v2152 = vpop.permute.xlu0 %2151
      %2154 = vset.pattern.permute.xlu0 3
      %2155 = vperm.xlu0 %2154, %v1974
      %v2156 = vpop.permute.xlu0 %2155
      %2158 = vset.pattern.permute.xlu0 3
      %2159 = vperm.xlu0 %2158, %v1975
      %v2160 = vpop.permute.xlu0 %2159
      %2162 = vset.pattern.permute.xlu0 3
      %2163 = vperm.xlu0 %2162, %v1976
      %v2164 = vpop.permute.xlu0 %2163
      %2166 = vset.pattern.permute.xlu0 3
      %2167 = vperm.xlu0 %2166, %v1977
      %v2168 = vpop.permute.xlu0 %2167
      %v2170 = vadd.f32 %v2130, %v2140
      %v2171 = vadd.f32 %v2131, %v2144
      %v2172 = vadd.f32 %v2132, %v2148
      %v2173 = vadd.f32 %v2133, %v2152
      %v2174 = vadd.f32 %v2134, %v2156
      %v2175 = vadd.f32 %v2135, %v2160
      %v2176 = vadd.f32 %v2136, %v2164
      %v2177 = vadd.f32 %v2137, %v2168
      %v2178 = vsub.f32 %v388, %v2106
      %v2179 = vsub.f32 %v388, %v2107
      %v2180 = vsub.f32 %v388, %v2108
      %v2181 = vsub.f32 %v388, %v2109
      %v2182 = vsub.f32 %v388, %v2110
      %v2183 = vsub.f32 %v388, %v2111
      %v2184 = vsub.f32 %v388, %v2112
      %v2185 = vsub.f32 %v388, %v2113
      %v2186 = vsub.f32 %v397, %v2170
      %v2187 = vsub.f32 %v397, %v2171
      %v2188 = vsub.f32 %v397, %v2172
      %v2189 = vsub.f32 %v397, %v2173
      %v2190 = vsub.f32 %v397, %v2174
      %v2191 = vsub.f32 %v397, %v2175
      %v2192 = vsub.f32 %v397, %v2176
      %v2193 = vsub.f32 %v397, %v2177
      %v2194 = vmul.f32 %v2178, %v2178
      %v2195 = vmul.f32 %v2179, %v2179
      %v2196 = vmul.f32 %v2180, %v2180
      %v2197 = vmul.f32 %v2181, %v2181
      %v2198 = vmul.f32 %v2182, %v2182
      %v2199 = vmul.f32 %v2183, %v2183
      %v2200 = vmul.f32 %v2184, %v2184
      %v2201 = vmul.f32 %v2185, %v2185
      %v2202 = vmul.f32 %v2186, %v2186
      %v2203 = vmul.f32 %v2187, %v2187
      %v2204 = vmul.f32 %v2188, %v2188
      %v2205 = vmul.f32 %v2189, %v2189
      %v2206 = vmul.f32 %v2190, %v2190
      %v2207 = vmul.f32 %v2191, %v2191
      %v2208 = vmul.f32 %v2192, %v2192
      %v2209 = vmul.f32 %v2193, %v2193
      %v2210 = vadd.f32 %v2194, %v2202
      %v2211 = vadd.f32 %v2195, %v2203
      %v2212 = vadd.f32 %v2196, %v2204
      %v2213 = vadd.f32 %v2197, %v2205
      %v2214 = vadd.f32 %v2198, %v2206
      %v2215 = vadd.f32 %v2199, %v2207
      %v2216 = vadd.f32 %v2200, %v2208
      %v2217 = vadd.f32 %v2201, %v2209
      %vm2218 = vcmp.le.f32.partialorder %v2210, 100.0
      %vm2219 = vcmp.le.f32.partialorder %v2211, 100.0
      %vm2220 = vcmp.le.f32.partialorder %v2212, 100.0
      %vm2221 = vcmp.le.f32.partialorder %v2213, 100.0
      %vm2222 = vcmp.le.f32.partialorder %v2214, 100.0
      %vm2223 = vcmp.le.f32.partialorder %v2215, 100.0
      %vm2224 = vcmp.le.f32.partialorder %v2216, 100.0
      %vm2225 = vcmp.le.f32.partialorder %v2217, 100.0
      %v2226 = vsel %vm2218, 1, 0
      %v2227 = vsel %vm2219, 1, 0
      %v2228 = vsel %vm2220, 1, 0
      %v2229 = vsel %vm2221, 1, 0
      %v2230 = vsel %vm2222, 1, 0
      %v2231 = vsel %vm2223, 1, 0
      %v2232 = vsel %vm2224, 1, 0
      %v2233 = vsel %vm2225, 1, 0
      %v2234 = vcvt.s32.f32 %v2226
      %v2235 = vcvt.s32.f32 %v2227
      %v2236 = vcvt.s32.f32 %v2228
      %v2237 = vcvt.s32.f32 %v2229
      %v2238 = vcvt.s32.f32 %v2230
      %v2239 = vcvt.s32.f32 %v2231
      %v2240 = vcvt.s32.f32 %v2232
      %v2241 = vcvt.s32.f32 %v2233
      %2242 = vadd.xlane.f32.xlu0 %v2234
      %v2243 = vpop.xlane.xlu0 %2242
      %2244 = vadd.xlane.f32.xlu0 %v2235
      %v2245 = vpop.xlane.xlu0 %2244
      %2246 = vadd.xlane.f32.xlu0 %v2236
      %v2247 = vpop.xlane.xlu0 %2246
      %2248 = vadd.xlane.f32.xlu0 %v2237
      %v2249 = vpop.xlane.xlu0 %2248
      %2250 = vadd.xlane.f32.xlu0 %v2238
      %v2251 = vpop.xlane.xlu0 %2250
      %2252 = vadd.xlane.f32.xlu0 %v2239
      %v2253 = vpop.xlane.xlu0 %2252
      %2254 = vadd.xlane.f32.xlu0 %v2240
      %v2255 = vpop.xlane.xlu0 %2254
      %2256 = vadd.xlane.f32.xlu0 %v2241
      %v2257 = vpop.xlane.xlu0 %2256
      %s2258 = scalar_lea.vmem %s172, 384
      %2259 = vst.msk [vmem:[%s2258] sm:$0xff] %vm470, %v2243
      %2260 = vst.msk [vmem:[%s2258 + $0x8] sm:$0xff] %vm470, %v2245
      %2261 = vst.msk [vmem:[%s2258 + $0x10] sm:$0xff] %vm470, %v2247
      %2262 = vst.msk [vmem:[%s2258 + $0x18] sm:$0xff] %vm470, %v2249
      %2263 = vst.msk [vmem:[%s2258 + $0x20] sm:$0xff] %vm470, %v2251
      %2264 = vst.msk [vmem:[%s2258 + $0x28] sm:$0xff] %vm470, %v2253
      %2265 = vst.msk [vmem:[%s2258 + $0x30] sm:$0xff] %vm470, %v2255
      %2266 = vst.msk [vmem:[%s2258 + $0x38] sm:$0xff] %vm470, %v2257
      %s2267 = scalar_lea.vmem %s166, 448
      %v2268 = vld [vmem:[%s2267] sm:$0xff]
      %v2269 = vld [vmem:[%s2267 + $0x8] sm:$0xff]
      %v2270 = vld [vmem:[%s2267 + $0x10] sm:$0xff]
      %v2271 = vld [vmem:[%s2267 + $0x18] sm:$0xff]
      %v2272 = vld [vmem:[%s2267 + $0x20] sm:$0xff]
      %v2273 = vld [vmem:[%s2267 + $0x28] sm:$0xff]
      %v2274 = vld [vmem:[%s2267 + $0x30] sm:$0xff]
      %v2275 = vld [vmem:[%s2267 + $0x38] sm:$0xff]
      %2277 = vset.pattern.permute.xlu0 0
      %2278 = vperm.xlu0 %2277, %v2268
      %v2279 = vpop.permute.xlu0 %2278
      %2282 = vset.pattern.permute.xlu0 0
      %2283 = vperm.xlu0 %2282, %v2269
      %v2284 = vpop.permute.xlu0 %2283
      %2287 = vset.pattern.permute.xlu0 0
      %2288 = vperm.xlu0 %2287, %v2270
      %v2289 = vpop.permute.xlu0 %2288
      %2292 = vset.pattern.permute.xlu0 0
      %2293 = vperm.xlu0 %2292, %v2271
      %v2294 = vpop.permute.xlu0 %2293
      %2297 = vset.pattern.permute.xlu0 0
      %2298 = vperm.xlu0 %2297, %v2272
      %v2299 = vpop.permute.xlu0 %2298
      %2302 = vset.pattern.permute.xlu0 0
      %2303 = vperm.xlu0 %2302, %v2273
      %v2304 = vpop.permute.xlu0 %2303
      %2307 = vset.pattern.permute.xlu0 0
      %2308 = vperm.xlu0 %2307, %v2274
      %v2309 = vpop.permute.xlu0 %2308
      %2312 = vset.pattern.permute.xlu0 0
      %2313 = vperm.xlu0 %2312, %v2275
      %v2314 = vpop.permute.xlu0 %2313
      %v2316 = vmul.f32 %v2279, %v226
      %v2317 = vmul.f32 %v2284, %v226
      %v2318 = vmul.f32 %v2289, %v226
      %v2319 = vmul.f32 %v2294, %v226
      %v2320 = vmul.f32 %v2299, %v226
      %v2321 = vmul.f32 %v2304, %v226
      %v2322 = vmul.f32 %v2309, %v226
      %v2323 = vmul.f32 %v2314, %v226
      %2324 = vset.pattern.permute.xlu0 1
      %2325 = vperm.xlu0 %2324, %v2268
      %v2326 = vpop.permute.xlu0 %2325
      %2328 = vset.pattern.permute.xlu0 1
      %2329 = vperm.xlu0 %2328, %v2269
      %v2330 = vpop.permute.xlu0 %2329
      %2332 = vset.pattern.permute.xlu0 1
      %2333 = vperm.xlu0 %2332, %v2270
      %v2334 = vpop.permute.xlu0 %2333
      %2336 = vset.pattern.permute.xlu0 1
      %2337 = vperm.xlu0 %2336, %v2271
      %v2338 = vpop.permute.xlu0 %2337
      %2340 = vset.pattern.permute.xlu0 1
      %2341 = vperm.xlu0 %2340, %v2272
      %v2342 = vpop.permute.xlu0 %2341
      %2344 = vset.pattern.permute.xlu0 1
      %2345 = vperm.xlu0 %2344, %v2273
      %v2346 = vpop.permute.xlu0 %2345
      %2348 = vset.pattern.permute.xlu0 1
      %2349 = vperm.xlu0 %2348, %v2274
      %v2350 = vpop.permute.xlu0 %2349
      %2352 = vset.pattern.permute.xlu0 1
      %2353 = vperm.xlu0 %2352, %v2275
      %v2354 = vpop.permute.xlu0 %2353
      %v2356 = vmul.f32 %v2326, %v267
      %v2357 = vmul.f32 %v2330, %v267
      %v2358 = vmul.f32 %v2334, %v267
      %v2359 = vmul.f32 %v2338, %v267
      %v2360 = vmul.f32 %v2342, %v267
      %v2361 = vmul.f32 %v2346, %v267
      %v2362 = vmul.f32 %v2350, %v267
      %v2363 = vmul.f32 %v2354, %v267
      %v2364 = vsub.f32 %v2316, %v2356
      %v2365 = vsub.f32 %v2317, %v2357
      %v2366 = vsub.f32 %v2318, %v2358
      %v2367 = vsub.f32 %v2319, %v2359
      %v2368 = vsub.f32 %v2320, %v2360
      %v2369 = vsub.f32 %v2321, %v2361
      %v2370 = vsub.f32 %v2322, %v2362
      %v2371 = vsub.f32 %v2323, %v2363
      %2372 = vset.pattern.permute.xlu0 2
      %2373 = vperm.xlu0 %2372, %v2268
      %v2374 = vpop.permute.xlu0 %2373
      %2376 = vset.pattern.permute.xlu0 2
      %2377 = vperm.xlu0 %2376, %v2269
      %v2378 = vpop.permute.xlu0 %2377
      %2380 = vset.pattern.permute.xlu0 2
      %2381 = vperm.xlu0 %2380, %v2270
      %v2382 = vpop.permute.xlu0 %2381
      %2384 = vset.pattern.permute.xlu0 2
      %2385 = vperm.xlu0 %2384, %v2271
      %v2386 = vpop.permute.xlu0 %2385
      %2388 = vset.pattern.permute.xlu0 2
      %2389 = vperm.xlu0 %2388, %v2272
      %v2390 = vpop.permute.xlu0 %2389
      %2392 = vset.pattern.permute.xlu0 2
      %2393 = vperm.xlu0 %2392, %v2273
      %v2394 = vpop.permute.xlu0 %2393
      %2396 = vset.pattern.permute.xlu0 2
      %2397 = vperm.xlu0 %2396, %v2274
      %v2398 = vpop.permute.xlu0 %2397
      %2400 = vset.pattern.permute.xlu0 2
      %2401 = vperm.xlu0 %2400, %v2275
      %v2402 = vpop.permute.xlu0 %2401
      %v2404 = vadd.f32 %v2364, %v2374
      %v2405 = vadd.f32 %v2365, %v2378
      %v2406 = vadd.f32 %v2366, %v2382
      %v2407 = vadd.f32 %v2367, %v2386
      %v2408 = vadd.f32 %v2368, %v2390
      %v2409 = vadd.f32 %v2369, %v2394
      %v2410 = vadd.f32 %v2370, %v2398
      %v2411 = vadd.f32 %v2371, %v2402
      %v2412 = vmul.f32 %v2326, %v226
      %v2413 = vmul.f32 %v2330, %v226
      %v2414 = vmul.f32 %v2334, %v226
      %v2415 = vmul.f32 %v2338, %v226
      %v2416 = vmul.f32 %v2342, %v226
      %v2417 = vmul.f32 %v2346, %v226
      %v2418 = vmul.f32 %v2350, %v226
      %v2419 = vmul.f32 %v2354, %v226
      %v2420 = vmul.f32 %v2279, %v267
      %v2421 = vmul.f32 %v2284, %v267
      %v2422 = vmul.f32 %v2289, %v267
      %v2423 = vmul.f32 %v2294, %v267
      %v2424 = vmul.f32 %v2299, %v267
      %v2425 = vmul.f32 %v2304, %v267
      %v2426 = vmul.f32 %v2309, %v267
      %v2427 = vmul.f32 %v2314, %v267
      %v2428 = vadd.f32 %v2412, %v2420
      %v2429 = vadd.f32 %v2413, %v2421
      %v2430 = vadd.f32 %v2414, %v2422
      %v2431 = vadd.f32 %v2415, %v2423
      %v2432 = vadd.f32 %v2416, %v2424
      %v2433 = vadd.f32 %v2417, %v2425
      %v2434 = vadd.f32 %v2418, %v2426
      %v2435 = vadd.f32 %v2419, %v2427
      %2436 = vset.pattern.permute.xlu0 3
      %2437 = vperm.xlu0 %2436, %v2268
      %v2438 = vpop.permute.xlu0 %2437
      %2440 = vset.pattern.permute.xlu0 3
      %2441 = vperm.xlu0 %2440, %v2269
      %v2442 = vpop.permute.xlu0 %2441
      %2444 = vset.pattern.permute.xlu0 3
      %2445 = vperm.xlu0 %2444, %v2270
      %v2446 = vpop.permute.xlu0 %2445
      %2448 = vset.pattern.permute.xlu0 3
      %2449 = vperm.xlu0 %2448, %v2271
      %v2450 = vpop.permute.xlu0 %2449
      %2452 = vset.pattern.permute.xlu0 3
      %2453 = vperm.xlu0 %2452, %v2272
      %v2454 = vpop.permute.xlu0 %2453
      %2456 = vset.pattern.permute.xlu0 3
      %2457 = vperm.xlu0 %2456, %v2273
      %v2458 = vpop.permute.xlu0 %2457
      %2460 = vset.pattern.permute.xlu0 3
      %2461 = vperm.xlu0 %2460, %v2274
      %v2462 = vpop.permute.xlu0 %2461
      %2464 = vset.pattern.permute.xlu0 3
      %2465 = vperm.xlu0 %2464, %v2275
      %v2466 = vpop.permute.xlu0 %2465
      %v2468 = vadd.f32 %v2428, %v2438
      %v2469 = vadd.f32 %v2429, %v2442
      %v2470 = vadd.f32 %v2430, %v2446
      %v2471 = vadd.f32 %v2431, %v2450
      %v2472 = vadd.f32 %v2432, %v2454
      %v2473 = vadd.f32 %v2433, %v2458
      %v2474 = vadd.f32 %v2434, %v2462
      %v2475 = vadd.f32 %v2435, %v2466
      %v2476 = vsub.f32 %v388, %v2404
      %v2477 = vsub.f32 %v388, %v2405
      %v2478 = vsub.f32 %v388, %v2406
      %v2479 = vsub.f32 %v388, %v2407
      %v2480 = vsub.f32 %v388, %v2408
      %v2481 = vsub.f32 %v388, %v2409
      %v2482 = vsub.f32 %v388, %v2410
      %v2483 = vsub.f32 %v388, %v2411
      %v2484 = vsub.f32 %v397, %v2468
      %v2485 = vsub.f32 %v397, %v2469
      %v2486 = vsub.f32 %v397, %v2470
      %v2487 = vsub.f32 %v397, %v2471
      %v2488 = vsub.f32 %v397, %v2472
      %v2489 = vsub.f32 %v397, %v2473
      %v2490 = vsub.f32 %v397, %v2474
      %v2491 = vsub.f32 %v397, %v2475
      %v2492 = vmul.f32 %v2476, %v2476
      %v2493 = vmul.f32 %v2477, %v2477
      %v2494 = vmul.f32 %v2478, %v2478
      %v2495 = vmul.f32 %v2479, %v2479
      %v2496 = vmul.f32 %v2480, %v2480
      %v2497 = vmul.f32 %v2481, %v2481
      %v2498 = vmul.f32 %v2482, %v2482
      %v2499 = vmul.f32 %v2483, %v2483
      %v2500 = vmul.f32 %v2484, %v2484
      %v2501 = vmul.f32 %v2485, %v2485
      %v2502 = vmul.f32 %v2486, %v2486
      %v2503 = vmul.f32 %v2487, %v2487
      %v2504 = vmul.f32 %v2488, %v2488
      %v2505 = vmul.f32 %v2489, %v2489
      %v2506 = vmul.f32 %v2490, %v2490
      %v2507 = vmul.f32 %v2491, %v2491
      %v2508 = vadd.f32 %v2492, %v2500
      %v2509 = vadd.f32 %v2493, %v2501
      %v2510 = vadd.f32 %v2494, %v2502
      %v2511 = vadd.f32 %v2495, %v2503
      %v2512 = vadd.f32 %v2496, %v2504
      %v2513 = vadd.f32 %v2497, %v2505
      %v2514 = vadd.f32 %v2498, %v2506
      %v2515 = vadd.f32 %v2499, %v2507
      %vm2516 = vcmp.le.f32.partialorder %v2508, 100.0
      %vm2517 = vcmp.le.f32.partialorder %v2509, 100.0
      %vm2518 = vcmp.le.f32.partialorder %v2510, 100.0
      %vm2519 = vcmp.le.f32.partialorder %v2511, 100.0
      %vm2520 = vcmp.le.f32.partialorder %v2512, 100.0
      %vm2521 = vcmp.le.f32.partialorder %v2513, 100.0
      %vm2522 = vcmp.le.f32.partialorder %v2514, 100.0
      %vm2523 = vcmp.le.f32.partialorder %v2515, 100.0
      %v2524 = vsel %vm2516, 1, 0
      %v2525 = vsel %vm2517, 1, 0
      %v2526 = vsel %vm2518, 1, 0
      %v2527 = vsel %vm2519, 1, 0
      %v2528 = vsel %vm2520, 1, 0
      %v2529 = vsel %vm2521, 1, 0
      %v2530 = vsel %vm2522, 1, 0
      %v2531 = vsel %vm2523, 1, 0
      %v2532 = vcvt.s32.f32 %v2524
      %v2533 = vcvt.s32.f32 %v2525
      %v2534 = vcvt.s32.f32 %v2526
      %v2535 = vcvt.s32.f32 %v2527
      %v2536 = vcvt.s32.f32 %v2528
      %v2537 = vcvt.s32.f32 %v2529
      %v2538 = vcvt.s32.f32 %v2530
      %v2539 = vcvt.s32.f32 %v2531
      %2540 = vadd.xlane.f32.xlu0 %v2532
      %v2541 = vpop.xlane.xlu0 %2540
      %2542 = vadd.xlane.f32.xlu0 %v2533
      %v2543 = vpop.xlane.xlu0 %2542
      %2544 = vadd.xlane.f32.xlu0 %v2534
      %v2545 = vpop.xlane.xlu0 %2544
      %2546 = vadd.xlane.f32.xlu0 %v2535
      %v2547 = vpop.xlane.xlu0 %2546
      %2548 = vadd.xlane.f32.xlu0 %v2536
      %v2549 = vpop.xlane.xlu0 %2548
      %2550 = vadd.xlane.f32.xlu0 %v2537
      %v2551 = vpop.xlane.xlu0 %2550
      %2552 = vadd.xlane.f32.xlu0 %v2538
      %v2553 = vpop.xlane.xlu0 %2552
      %2554 = vadd.xlane.f32.xlu0 %v2539
      %v2555 = vpop.xlane.xlu0 %2554
      %s2556 = scalar_lea.vmem %s172, 448
      %2557 = vst.msk [vmem:[%s2556] sm:$0xff] %vm470, %v2541
      %2558 = vst.msk [vmem:[%s2556 + $0x8] sm:$0xff] %vm470, %v2543
      %2559 = vst.msk [vmem:[%s2556 + $0x10] sm:$0xff] %vm470, %v2545
      %2560 = vst.msk [vmem:[%s2556 + $0x18] sm:$0xff] %vm470, %v2547
      %2561 = vst.msk [vmem:[%s2556 + $0x20] sm:$0xff] %vm470, %v2549
      %2562 = vst.msk [vmem:[%s2556 + $0x28] sm:$0xff] %vm470, %v2551
      %2563 = vst.msk [vmem:[%s2556 + $0x30] sm:$0xff] %vm470, %v2553
      %2564 = vst.msk [vmem:[%s2556 + $0x38] sm:$0xff] %vm470, %v2555
      %s2565 = smul.u32 64, %s14
      %p2566 = scmp.lt.s32.totalorder %s2565, 127
      %s2567 = scalar_select %p2566, %s2565, 127
      %s2568 = smul.addr %s2567, 8
      %s2569 = scalar_lea.vmem %s3, %s2568
      // Predicated region
      $region33: #{ransac_forward.1} parent=31 // pred_check
        %p2570 = pneg %p100
      $region34: #{ransac_forward.1} parent=31 // pred_check_branch
        %2572 = sbr.rel (%p2570) target = $region36
      $region35: #{ransac_forward.1} parent=31 // pred_region
        %s2573 = smul.u32 64, %s14
      $region36: #{ransac_forward.1} parent=31 // pred_fallthru
        _
    $region32: #{ransac_forward.1} parent=5 // pred_fallthru
      _
    %p2574 = scmp.le.s32.totalorder 2, %s9
    // Predicated region
    $region37: #{ransac_forward.1} parent=5 // pred_check
      %p2575 = pneg %p2574
    $region38: #{ransac_forward.1} parent=5 // pred_check_branch
      %2577 = sbr.rel (%p2575) target = $region40
    $region39: #{ransac_forward.1} parent=5 // pred_region
      %s2578 = ssub.s32 %s9, 2
      // Predicated region
      $region41: #{ransac_forward.1} parent=39 // pred_check
        %p2579 = pneg %p106
      $region42: #{ransac_forward.1} parent=39 // pred_check_branch
        %2581 = sbr.rel (%p2579) target = $region44
      $region43: #{ransac_forward.1} parent=39 // pred_region
        %s2582 = smul.u32 64, %s15
        %p2583 = scmp.lt.s32.totalorder %s2582, 127
        %s2584 = scalar_select %p2583, %s2582, 127
        %s2585 = smul.addr %s2584, 8
        %s2586 = scalar_lea.vmem %s3, %s2585
      $region44: #{ransac_forward.1} parent=39 // pred_fallthru
        _
    $region40: #{ransac_forward.1} parent=5 // pred_fallthru
      _
  $region6: #{ransac_forward.1} parent=0 // loop_footer
    %s13 = sadd.s32 1, %s9
  $region7: #{ransac_forward.1} parent=0 // loop_footer_branch
    %8 = sbr.rel target = $region3
  $region8: #{ransac_forward.1} parent=0 // loop_exit
    _

</llo_original>
